<compile_context>
chip_gen: v5e
topology: v5e:2x2
jax: 0.10.0
libtpu: 0.0.40
codegen_flags: <defaults>
</compile_context>

<pallas_src>
import functools
import math

import jax
import jax.numpy as jnp
from jax import lax
from jax.experimental import pallas as pl
from jax.experimental.pallas import tpu as pltpu


# ----------------------------------------------------------------------------
# Per-generation VMEM budget (v7x: 64 MiB, v5e/v6e: 128 MiB) minus headroom.
# ----------------------------------------------------------------------------
def _vmem_limit_bytes():
    cap = 128 * 1024 * 1024
    try:
        cap = int(pltpu.get_tpu_info().vmem_capacity_bytes)
    except Exception:
        pass
    return int(min(128 * 1024 * 1024, max(32 * 1024 * 1024, cap - 8 * 1024 * 1024)))


def _pick_batch_block(N, H, per_image_bytes, budget_bytes):
    """NB images per grid step: target M ~ 256 matmul rows (v6e/v7x systolic
    depth), shrink to fit VMEM, and make NB divide N."""
    # TODO(synk): when N // NB < 2, add a second "parallel" grid axis over row
    # strips so both v7x TensorCores get work.
    nb = max(1, min(N, max(1, 256 // max(H, 1))))
    while nb > 1 and nb * per_image_bytes > budget_bytes:
        nb -= 1
    while N % nb:
        nb -= 1
    return nb


# ----------------------------------------------------------------------------
# Fused kernel: conv(3x3) -> PixelShuffle(2) -> conv(3x3) for NB images.
# ----------------------------------------------------------------------------
def _fused_kernel(x_ref, big1_ref, b1_ref, big2_ref, b2_ref, o_ref,
                  xcat_ref, p0_ref, p1_ref, *, NB, H, W, Cin, C):
    """Refs:
      x_ref    : (NB, H, Cin*W)       bf16  channel-major lanes (ci*W + w)
      big1_ref : (3*Cin*W, 4*W*C)     bf16  conv1 weights: row taps folded into K,
                                            even/odd output-row parities fused on N
      b1_ref   : (1, 4*W*C)           f32   conv1 bias per output lane
      big2_ref : (3, 2*W*C, Lout)     bf16  conv2 banded weights per row tap
      b2_ref   : (1, Lout)            f32   conv2 bias per output lane
      o_ref    : (NB, 2, H, Lout)           output split by output-row parity
      xcat_ref : (NB*H, 3*Cin*W)      bf16  im2row slab [row-1 | row | row+1]
      p0_ref   : (NB*(H+1), 2*W*C)    bf16  even high-res rows (+1 zero halo / image)
      p1_ref   : (NB*(H+1), 2*W*C)    bf16  odd  high-res rows (+1 zero halo / image)
    """
    f32 = jnp.float32
    bf16 = jnp.bfloat16
    WCin = W * Cin
    L1 = 2 * W * C
    Hp = H + 1

    zrow_x = jnp.zeros((1, WCin), bf16)
    zrow_p = jnp.zeros((1, L1), bf16)

    # ---- im2row: fold the 3 conv1 row taps into K (zero row-halos land in the
    #      first / last row of each tap section; column halos are in the weights).
    for n in range(NB):
        r0 = n * H
        rows = x_ref[n]                                        # (H, WCin) bf16
        xcat_ref[r0:r0 + 1, 0:WCin] = zrow_x                   # tap 0: row h-1
        xcat_ref[r0 + 1:r0 + H, 0:WCin] = rows[0:H - 1, :]
        xcat_ref[r0:r0 + H, WCin:2 * WCin] = rows              # tap 1: row h
        xcat_ref[r0:r0 + H - 1, 2 * WCin:3 * WCin] = rows[1:H, :]  # tap 2: row h+1
        xcat_ref[r0 + H - 1:r0 + H, 2 * WCin:3 * WCin] = zrow_x

    # ---- conv1 (+bias): ONE bf16 MXU matmul with f32 accumulation.
    #      N axis = [even-row plane | odd-row plane] of the shuffled image.
    s = jnp.dot(xcat_ref[...], big1_ref[...], preferred_element_type=f32)
    s = s + b1_ref[...]                                        # (NB*H, 4*W*C) f32

    # ---- scatter into the parity planes (bf16) with per-image row halos.
    for n in range(NB):
        src = n * H
        dst = n * Hp
        p0_ref[dst:dst + H, :] = s[src:src + H, 0:L1].astype(bf16)
        p0_ref[dst + H:dst + H + 1, :] = zrow_p                # high-res row 2H halo
        p1_ref[dst:dst + 1, :] = zrow_p                        # high-res row -1 halo
        p1_ref[dst + 1:dst + H + 1, :] = s[src:src + H, L1:2 * L1].astype(bf16)

    # ---- conv2: 3 accumulating row-tap matmuls per output-row parity over one
    #      batched slab (M = NB*(H+1)-1); accumulator initialized with the bias;
    #      the 1 junk cross-image boundary row per image is discarded on store.
    M2 = NB * Hp - 1
    bias2 = b2_ref[...]

    def tap(src_ref, r0, k):
        return jnp.dot(src_ref[r0:r0 + M2, :], big2_ref[k, :, :],
                       preferred_element_type=f32)

    # output rows 2h   read shuffled rows 2h-1, 2h, 2h+1 -> p1[h-1], p0[h], p1[h]
    out_even = bias2 + tap(p1_ref, 0, 0)
    out_even = out_even + tap(p0_ref, 0, 1)
    out_even = out_even + tap(p1_ref, 1, 2)
    # output rows 2h+1 read shuffled rows 2h, 2h+1, 2h+2 -> p0[h], p1[h], p0[h+1]
    out_odd = bias2 + tap(p0_ref, 0, 0)
    out_odd = out_odd + tap(p1_ref, 1, 1)
    out_odd = out_odd + tap(p0_ref, 1, 2)

    # ---- store the H valid rows of each image (lane-dense, 128-multiple wide).
    for n in range(NB):
        r = n * Hp
        o_ref[n, 0, :, :] = out_even[r:r + H, :].astype(o_ref.dtype)
        o_ref[n, 1, :, :] = out_odd[r:r + H, :].astype(o_ref.dtype)


# ----------------------------------------------------------------------------
# One-time weight preprocessing (hoisted out of the forward path): fold column
# taps, channel contraction and the PixelShuffle(2) permutation into lane-dense
# banded bf16 matrices.  Depends on the image width W.
# ----------------------------------------------------------------------------
def build_prepared_params(params, W, scale=2):
    assert scale == 2
    w_up, b_up = params["w_up"], params["b_up"]
    w_out, b_out = params["w_out"], params["b_out"]
    KH, KW, Cin, C4 = w_up.shape
    assert KH == 3 and KW == 3, "kernel_size=3 (padding=1) assumed"
    C = C4 // 4
    assert C == Cin and w_out.shape[2] == C
    Cout = w_out.shape[-1]
    Wo = 2 * W
    # pad output channels so the store lane width (2W * CoutP) is a 128 multiple
    step = 128 // math.gcd(128, Wo)
    CoutP = ((Cout + step - 1) // step) * step
    f32 = jnp.float32

    # conv1: output channel o1 = c*4 + di*2 + dj (PyTorch PixelShuffle order)
    w1 = w_up.astype(f32).reshape(KH, KW, Cin, C, 2, 2)         # (ti,tj,ci,c,di,dj)
    band1 = (jnp.arange(W)[:, None, None]
             == jnp.arange(W)[None, :, None]
             + jnp.arange(3)[None, None, :] - 1).astype(f32)    # (p, w, tj)
    # big1[ti*Cin*W + ci*W + p, di*2WC + w*2C + dj*C + c]
    big1 = jnp.einsum('pwj,tjicde->tipdwec', band1, w1)
    big1 = big1.reshape(3 * Cin * W, 4 * W * C).astype(jnp.bfloat16)

    b1 = jnp.transpose(b_up.astype(f32).reshape(C, 2, 2), (1, 2, 0))   # (di,dj,c)
    bias1 = jnp.broadcast_to(b1[:, None, :, :], (2, W, 2, C)).reshape(1, 4 * W * C)

    # conv2 over the 2W-wide shuffled rows; output channels zero-padded to CoutP
    w2 = jnp.pad(w_out.astype(f32), ((0, 0), (0, 0), (0, 0), (0, CoutP - Cout)))
    band2 = (jnp.arange(Wo)[:, None, None]
             == jnp.arange(Wo)[None, :, None]
             + jnp.arange(3)[None, None, :] - 1).astype(f32)    # (p, q, tj)
    # big2[k, p*C + c, q*CoutP + o]
    big2 = jnp.einsum('pqj,kjco->kpcqo', band2, w2)
    big2 = big2.reshape(3, Wo * C, Wo * CoutP).astype(jnp.bfloat16)

    bias2 = jnp.broadcast_to(
        jnp.pad(b_out.astype(f32), (0, CoutP - Cout))[None, :],
        (Wo, CoutP)).reshape(1, Wo * CoutP)

    return dict(big1=big1, bias1=bias1, big2=big2, bias2=bias2,
                meta=dict(W=W, Cin=Cin, C=C, Cout=Cout, CoutP=CoutP))


# ----------------------------------------------------------------------------
# UpsamplerDecoder forward (NCHW in / NCHW out) using prepared weights.
# ----------------------------------------------------------------------------
def upsampler_decoder_forward(x_nchw, prepared, scale=2):
    assert scale == 2, "kernel implements the scale=2 (single PixelShuffle stage) config"
    # TODO(synk): scale=4 (two PixelShuffle stages) / scale=3 need extra stages.
    meta = prepared["meta"]
    W, Cin, C, Cout, CoutP = (meta["W"], meta["Cin"], meta["C"],
                              meta["Cout"], meta["CoutP"])
    big1, bias1 = prepared["big1"], prepared["bias1"]
    big2, bias2 = prepared["big2"], prepared["bias2"]

    N, Cx, H, Wx = x_nchw.shape
    assert Cx == Cin and Wx == W
    Wo = 2 * W
    Lout = Wo * CoutP

    vmem_budget = _vmem_limit_bytes()
    # Gate the banded-weight path by the per-generation VMEM budget.
    weight_bytes = 2 * ((big1.size + big2.size) * 2 + (bias1.size + bias2.size) * 4)
    if weight_bytes > (vmem_budget * 3) // 5:
        # TODO(synk): row-strip im2col path for large W * n_feats.
        raise NotImplementedError("banded-weight path only valid for small W*n_feats")

    per_img = (H * Cin * W * 2 * 2            # input block  (bf16, double-buffered)
               + 2 * H * Lout * 4 * 2         # output block (f32,  double-buffered)
               + H * 3 * Cin * W * 2          # xcat scratch (bf16)
               + 2 * (H + 1) * 2 * W * C * 2)  # p0/p1 scratch (bf16)
    NB = _pick_batch_block(N, H, per_img,
                           max(per_img, vmem_budget - weight_bytes - (4 << 20)))

    # NCHW -> (N, H, Cin*W) bf16: only the (Cin, H) axes are swapped (the minor W
    # axis stays put); the channel-major lane order is baked into big1.
    x_flat = jnp.transpose(x_nchw, (0, 2, 1, 3)).reshape(N, H, Cin * W)
    x_flat = x_flat.astype(jnp.bfloat16)

    kernel = functools.partial(_fused_kernel, NB=NB, H=H, W=W, Cin=Cin, C=C)

    def run(single_buffer_weights):
        wmode = pl.Buffered(1) if single_buffer_weights else None

        def wspec(shape):
            zeros = (0,) * len(shape)
            index_map = lambda n, _z=zeros: _z
            if wmode is None:
                return pl.BlockSpec(shape, index_map)
            return pl.BlockSpec(shape, index_map, pipeline_mode=wmode)

        return pl.pallas_call(
            kernel,
            out_shape=jax.ShapeDtypeStruct((N, 2, H, Lout), x_nchw.dtype),
            grid=(N // NB,),
            in_specs=[
                pl.BlockSpec((NB, H, Cin * W), lambda n: (n, 0, 0)),
                wspec((3 * Cin * W, 4 * W * C)),
                wspec((1, 4 * W * C)),
                wspec((3, 2 * W * C, Lout)),
                wspec((1, Lout)),
            ],
            out_specs=pl.BlockSpec((NB, 2, H, Lout), lambda n: (n, 0, 0, 0)),
            scratch_shapes=[
                pltpu.VMEM((NB * H, 3 * Cin * W), jnp.bfloat16),
                pltpu.VMEM((NB * (H + 1), 2 * W * C), jnp.bfloat16),
                pltpu.VMEM((NB * (H + 1), 2 * W * C), jnp.bfloat16),
            ],
            compiler_params=pltpu.CompilerParams(
                dimension_semantics=("parallel",),
                vmem_limit_bytes=vmem_budget,
            ),
        )(x_flat, big1, bias1, big2, bias2)

    try:
        out = run(True)     # constant weights single-buffered (pl.Buffered(1))
    except Exception:
        # TODO(synk): this jax version rejects pipeline_mode=pl.Buffered(1);
        # fall back to the default (double-buffered) weight windows.
        out = run(False)

    # (N, 2, H, 2W*CoutP) -> NCHW (Cout, 2H, 2W).  Tiny at these shapes.
    # TODO(synk): at production sizes fold the parity interleave + channel-major
    # ordering into the kernel store (strided sublane stores) to drop this pass.
    y = out.reshape(N, 2, H, Wo, CoutP)[..., :Cout]
    y = jnp.transpose(y, (0, 2, 1, 3, 4)).reshape(N, 2 * H, Wo, Cout)
    return jnp.transpose(y, (0, 3, 1, 2))


# ----------------------------------------------------------------------------
# Pure-JAX reference (lax.conv + PixelShuffle, NCHW) for validation.
# ----------------------------------------------------------------------------
def _reference(x_nchw, params, scale=2):
    def conv_nchw(x, w_hwio, b):
        w_oihw = jnp.transpose(w_hwio, (3, 2, 0, 1))
        y = lax.conv_general_dilated(
            x, w_oihw, window_strides=(1, 1), padding="SAME",
            dimension_numbers=("NCHW", "OIHW", "NCHW"))
        return y + b.reshape(1, -1, 1, 1)

    x = conv_nchw(x_nchw, params["w_up"], params["b_up"])
    N, Crr, H, W = x.shape
    r = scale
    C = Crr // (r * r)
    x = x.reshape(N, C, r, r, H, W)
    x = jnp.transpose(x, (0, 1, 4, 2, 5, 3)).reshape(N, C, H * r, W * r)
    x = conv_nchw(x, params["w_out"], params["b_out"])
    return x


if __name__ == "__main__":
    # Small, module-consistent shapes.
    N, n_feats, out_channel, H, W = 2, 4, 3, 16, 16
    kernel_size, scale = 3, 2

    key = jax.random.PRNGKey(0)
    k_x, k_wu, k_bu, k_wo, k_bo = jax.random.split(key, 5)

    x = jax.random.normal(k_x, (N, n_feats, H, W), jnp.float32)

    # Deterministic synthetic parameters (HWIO). Tail conv uses 0.1 gain,
    # mimicking tools.initialize_weights(..., 0.1).
    params = {
        "w_up": jax.random.normal(
            k_wu, (3, 3, n_feats, 4 * n_feats), jnp.float32) * 0.05,
        "b_up": jax.random.normal(k_bu, (4 * n_feats,), jnp.float32) * 0.01,
        "w_out": jax.random.normal(
            k_wo, (kernel_size, kernel_size, n_feats, out_channel),
            jnp.float32) * 0.1,
        "b_out": jax.random.normal(k_bo, (out_channel,), jnp.float32) * 0.01,
    }

    # Weight preprocessing is hoisted: done ONCE when the weights are loaded.
    prepared = build_prepared_params(params, W=W, scale=scale)

    out = upsampler_decoder_forward(x, prepared, scale=scale)
    out = jax.block_until_ready(out)

    ref = jax.block_until_ready(_reference(x, params, scale=scale))
    assert out.shape == (N, out_channel, H * scale, W * scale), out.shape
    # bf16 matmul operands / bf16 conv1->conv2 intermediate: loosen the tolerance.
    assert jnp.allclose(out, ref, rtol=3e-2, atol=3e-2), \
        float(jnp.max(jnp.abs(out - ref)))

    print("KERNEL_OK")
</pallas_src>

<mosaic_0001>
module attributes {stable_mosaic.version = 11 : i64} {
  func.func @_fused_kernel(%arg0: i32, %arg1: memref<2x16x64xbf16, #tpu.memory_space<vmem>>, %arg2: memref<192x256xbf16, #tpu.memory_space<vmem>>, %arg3: memref<1x256xf32, #tpu.memory_space<vmem>>, %arg4: memref<3x128x128xbf16, #tpu.memory_space<vmem>>, %arg5: memref<1x128xf32, #tpu.memory_space<vmem>>, %arg6: memref<2x2x16x128xf32, #tpu.memory_space<vmem>>, %arg7: memref<32x192xbf16, #tpu.memory_space<vmem>>, %arg8: memref<34x128xbf16, #tpu.memory_space<vmem>>, %arg9: memref<34x128xbf16, #tpu.memory_space<vmem>>) attributes {dimension_semantics = [#tpu.dimension_semantics<parallel>], iteration_bounds = array<i64: 1>, scalar_prefetch = 0 : i64, scratch_operands = 3 : i64, tpu.core_type = #tpu.core_type<tc>, window_params = [{transform_indices = @transform_0, window_bounds = array<i64: 2, 16, 64>}, {pipeline_mode = #tpu.pipeline_mode<synchronous>, transform_indices = @transform_1, window_bounds = array<i64: 192, 256>}, {pipeline_mode = #tpu.pipeline_mode<synchronous>, transform_indices = @transform_2, window_bounds = array<i64: 1, 256>}, {pipeline_mode = #tpu.pipeline_mode<synchronous>, transform_indices = @transform_3, window_bounds = array<i64: 3, 128, 128>}, {pipeline_mode = #tpu.pipeline_mode<synchronous>, transform_indices = @transform_4, window_bounds = array<i64: 1, 128>}, {transform_indices = @transform_5, window_bounds = array<i64: 2, 2, 16, 128>}]} {
    %cst = arith.constant 0.000000e+00 : bf16
    %0 = vector.broadcast %cst : bf16 to vector<1x64xbf16>
    %cst_0 = arith.constant 0.000000e+00 : bf16
    %1 = vector.broadcast %cst_0 : bf16 to vector<1x128xbf16>
    %c0 = arith.constant 0 : index
    %c0_1 = arith.constant 0 : index
    %c0_2 = arith.constant 0 : index
    %2 = vector.load %arg1[%c0, %c0_1, %c0_2] : memref<2x16x64xbf16, #tpu.memory_space<vmem>>, vector<1x16x64xbf16>
    %3 = vector.shape_cast %2 : vector<1x16x64xbf16> to vector<16x64xbf16>
    %c0_3 = arith.constant 0 : index
    %c0_4 = arith.constant 0 : index
    %4 = vector.load %arg7[%c0_3, %c0_4] : memref<32x192xbf16, #tpu.memory_space<vmem>>, vector<1x64xbf16>
    tpu.vector_store %arg7[%c0_3, %c0_4], %0 {strides = array<i32>} : memref<32x192xbf16, #tpu.memory_space<vmem>>, vector<1x64xbf16>,
    %5 = vector.extract_strided_slice %3 {offsets = [0, 0], sizes = [15, 64], strides = [1, 1]} : vector<16x64xbf16> to vector<15x64xbf16>
    %c1 = arith.constant 1 : index
    %c0_5 = arith.constant 0 : index
    %6 = vector.load %arg7[%c1, %c0_5] : memref<32x192xbf16, #tpu.memory_space<vmem>>, vector<15x64xbf16>
    tpu.vector_store %arg7[%c1, %c0_5], %5 {strides = array<i32>} : memref<32x192xbf16, #tpu.memory_space<vmem>>, vector<15x64xbf16>,
    %c0_6 = arith.constant 0 : index
    %c64 = arith.constant 64 : index
    %7 = vector.load %arg7[%c0_6, %c64] : memref<32x192xbf16, #tpu.memory_space<vmem>>, vector<16x64xbf16>
    tpu.vector_store %arg7[%c0_6, %c64], %3 {strides = array<i32>} : memref<32x192xbf16, #tpu.memory_space<vmem>>, vector<16x64xbf16>,
    %8 = vector.extract_strided_slice %3 {offsets = [1, 0], sizes = [15, 64], strides = [1, 1]} : vector<16x64xbf16> to vector<15x64xbf16>
    %c0_7 = arith.constant 0 : index
    %c128 = arith.constant 128 : index
    %9 = vector.load %arg7[%c0_7, %c128] : memref<32x192xbf16, #tpu.memory_space<vmem>>, vector<15x64xbf16>
    tpu.vector_store %arg7[%c0_7, %c128], %8 {strides = array<i32>} : memref<32x192xbf16, #tpu.memory_space<vmem>>, vector<15x64xbf16>,
    %c15 = arith.constant 15 : index
    %c128_8 = arith.constant 128 : index
    %10 = vector.load %arg7[%c15, %c128_8] : memref<32x192xbf16, #tpu.memory_space<vmem>>, vector<1x64xbf16>
    tpu.vector_store %arg7[%c15, %c128_8], %0 {strides = array<i32>} : memref<32x192xbf16, #tpu.memory_space<vmem>>, vector<1x64xbf16>,
    %c1_9 = arith.constant 1 : index
    %c0_10 = arith.constant 0 : index
    %c0_11 = arith.constant 0 : index
    %11 = vector.load %arg1[%c1_9, %c0_10, %c0_11] : memref<2x16x64xbf16, #tpu.memory_space<vmem>>, vector<1x16x64xbf16>
    %12 = vector.shape_cast %11 : vector<1x16x64xbf16> to vector<16x64xbf16>
    %c16 = arith.constant 16 : index
    %c0_12 = arith.constant 0 : index
    %13 = vector.load %arg7[%c16, %c0_12] : memref<32x192xbf16, #tpu.memory_space<vmem>>, vector<1x64xbf16>
    tpu.vector_store %arg7[%c16, %c0_12], %0 {strides = array<i32>} : memref<32x192xbf16, #tpu.memory_space<vmem>>, vector<1x64xbf16>,
    %14 = vector.extract_strided_slice %12 {offsets = [0, 0], sizes = [15, 64], strides = [1, 1]} : vector<16x64xbf16> to vector<15x64xbf16>
    %c17 = arith.constant 17 : index
    %c0_13 = arith.constant 0 : index
    %15 = vector.load %arg7[%c17, %c0_13] : memref<32x192xbf16, #tpu.memory_space<vmem>>, vector<15x64xbf16>
    tpu.vector_store %arg7[%c17, %c0_13], %14 {strides = array<i32>} : memref<32x192xbf16, #tpu.memory_space<vmem>>, vector<15x64xbf16>,
    %c16_14 = arith.constant 16 : index
    %c64_15 = arith.constant 64 : index
    %16 = vector.load %arg7[%c16_14, %c64_15] : memref<32x192xbf16, #tpu.memory_space<vmem>>, vector<16x64xbf16>
    tpu.vector_store %arg7[%c16_14, %c64_15], %12 {strides = array<i32>} : memref<32x192xbf16, #tpu.memory_space<vmem>>, vector<16x64xbf16>,
    %17 = vector.extract_strided_slice %12 {offsets = [1, 0], sizes = [15, 64], strides = [1, 1]} : vector<16x64xbf16> to vector<15x64xbf16>
    %c16_16 = arith.constant 16 : index
    %c128_17 = arith.constant 128 : index
    %18 = vector.load %arg7[%c16_16, %c128_17] : memref<32x192xbf16, #tpu.memory_space<vmem>>, vector<15x64xbf16>
    tpu.vector_store %arg7[%c16_16, %c128_17], %17 {strides = array<i32>} : memref<32x192xbf16, #tpu.memory_space<vmem>>, vector<15x64xbf16>,
    %c31 = arith.constant 31 : index
    %c128_18 = arith.constant 128 : index
    %19 = vector.load %arg7[%c31, %c128_18] : memref<32x192xbf16, #tpu.memory_space<vmem>>, vector<1x64xbf16>
    tpu.vector_store %arg7[%c31, %c128_18], %0 {strides = array<i32>} : memref<32x192xbf16, #tpu.memory_space<vmem>>, vector<1x64xbf16>,
    %c0_19 = arith.constant 0 : index
    %c0_20 = arith.constant 0 : index
    %20 = vector.load %arg7[%c0_19, %c0_20] : memref<32x192xbf16, #tpu.memory_space<vmem>>, vector<32x192xbf16>
    %c0_21 = arith.constant 0 : index
    %c0_22 = arith.constant 0 : index
    %21 = vector.load %arg2[%c0_21, %c0_22] : memref<192x256xbf16, #tpu.memory_space<vmem>>, vector<192x256xbf16>
    %cst_23 = arith.constant dense<0.000000e+00> : vector<32x256xf32>
    %22 = tpu.matmul %20, %21, %cst_23 {dimension_numbers = #tpu.dot_dimension_numbers<[1], [0], [0], [1], [0, 0, 1, 1], [], []>} : vector<32x192xbf16>, vector<192x256xbf16>, vector<32x256xf32> -> vector<32x256xf32>
    %c0_24 = arith.constant 0 : index
    %c0_25 = arith.constant 0 : index
    %23 = vector.load %arg3[%c0_24, %c0_25] : memref<1x256xf32, #tpu.memory_space<vmem>>, vector<1x256xf32>
    %24 = vector.broadcast %23 : vector<1x256xf32> to vector<32x256xf32>
    %25 = arith.addf %22, %24 : vector<32x256xf32>
    %26 = vector.extract_strided_slice %25 {offsets = [0, 0], sizes = [16, 128], strides = [1, 1]} : vector<32x256xf32> to vector<16x128xf32>
    %27 = arith.truncf %26 : vector<16x128xf32> to vector<16x128xbf16>
    %c0_26 = arith.constant 0 : index
    %c0_27 = arith.constant 0 : index
    %28 = vector.load %arg8[%c0_26, %c0_27] : memref<34x128xbf16, #tpu.memory_space<vmem>>, vector<16x128xbf16>
    tpu.vector_store %arg8[%c0_26, %c0_27], %27 {strides = array<i32>} : memref<34x128xbf16, #tpu.memory_space<vmem>>, vector<16x128xbf16>,
    %c16_28 = arith.constant 16 : index
    %c0_29 = arith.constant 0 : index
    %29 = vector.load %arg8[%c16_28, %c0_29] : memref<34x128xbf16, #tpu.memory_space<vmem>>, vector<1x128xbf16>
    tpu.vector_store %arg8[%c16_28, %c0_29], %1 {strides = array<i32>} : memref<34x128xbf16, #tpu.memory_space<vmem>>, vector<1x128xbf16>,
    %c0_30 = arith.constant 0 : index
    %c0_31 = arith.constant 0 : index
    %30 = vector.load %arg9[%c0_30, %c0_31] : memref<34x128xbf16, #tpu.memory_space<vmem>>, vector<1x128xbf16>
    tpu.vector_store %arg9[%c0_30, %c0_31], %1 {strides = array<i32>} : memref<34x128xbf16, #tpu.memory_space<vmem>>, vector<1x128xbf16>,
    %31 = vector.extract_strided_slice %25 {offsets = [0, 128], sizes = [16, 128], strides = [1, 1]} : vector<32x256xf32> to vector<16x128xf32>
    %32 = arith.truncf %31 : vector<16x128xf32> to vector<16x128xbf16>
    %c1_32 = arith.constant 1 : index
    %c0_33 = arith.constant 0 : index
    %33 = vector.load %arg9[%c1_32, %c0_33] : memref<34x128xbf16, #tpu.memory_space<vmem>>, vector<16x128xbf16>
    tpu.vector_store %arg9[%c1_32, %c0_33], %32 {strides = array<i32>} : memref<34x128xbf16, #tpu.memory_space<vmem>>, vector<16x128xbf16>,
    %34 = vector.extract_strided_slice %25 {offsets = [16, 0], sizes = [16, 128], strides = [1, 1]} : vector<32x256xf32> to vector<16x128xf32>
    %35 = arith.truncf %34 : vector<16x128xf32> to vector<16x128xbf16>
    %c17_34 = arith.constant 17 : index
    %c0_35 = arith.constant 0 : index
    %36 = vector.load %arg8[%c17_34, %c0_35] : memref<34x128xbf16, #tpu.memory_space<vmem>>, vector<16x128xbf16>
    tpu.vector_store %arg8[%c17_34, %c0_35], %35 {strides = array<i32>} : memref<34x128xbf16, #tpu.memory_space<vmem>>, vector<16x128xbf16>,
    %c33 = arith.constant 33 : index
    %c0_36 = arith.constant 0 : index
    %37 = vector.load %arg8[%c33, %c0_36] : memref<34x128xbf16, #tpu.memory_space<vmem>>, vector<1x128xbf16>
    tpu.vector_store %arg8[%c33, %c0_36], %1 {strides = array<i32>} : memref<34x128xbf16, #tpu.memory_space<vmem>>, vector<1x128xbf16>,
    %c17_37 = arith.constant 17 : index
    %c0_38 = arith.constant 0 : index
    %38 = vector.load %arg9[%c17_37, %c0_38] : memref<34x128xbf16, #tpu.memory_space<vmem>>, vector<1x128xbf16>
    tpu.vector_store %arg9[%c17_37, %c0_38], %1 {strides = array<i32>} : memref<34x128xbf16, #tpu.memory_space<vmem>>, vector<1x128xbf16>,
    %39 = vector.extract_strided_slice %25 {offsets = [16, 128], sizes = [16, 128], strides = [1, 1]} : vector<32x256xf32> to vector<16x128xf32>
    %40 = arith.truncf %39 : vector<16x128xf32> to vector<16x128xbf16>
    %c18 = arith.constant 18 : index
    %c0_39 = arith.constant 0 : index
    %41 = vector.load %arg9[%c18, %c0_39] : memref<34x128xbf16, #tpu.memory_space<vmem>>, vector<16x128xbf16>
    tpu.vector_store %arg9[%c18, %c0_39], %40 {strides = array<i32>} : memref<34x128xbf16, #tpu.memory_space<vmem>>, vector<16x128xbf16>,
    %c0_40 = arith.constant 0 : index
    %c0_41 = arith.constant 0 : index
    %42 = vector.load %arg5[%c0_40, %c0_41] : memref<1x128xf32, #tpu.memory_space<vmem>>, vector<1x128xf32>
    %c0_42 = arith.constant 0 : index
    %c0_43 = arith.constant 0 : index
    %43 = vector.load %arg9[%c0_42, %c0_43] : memref<34x128xbf16, #tpu.memory_space<vmem>>, vector<33x128xbf16>
    %c0_44 = arith.constant 0 : index
    %c0_45 = arith.constant 0 : index
    %c0_46 = arith.constant 0 : index
    %44 = vector.load %arg4[%c0_44, %c0_45, %c0_46] : memref<3x128x128xbf16, #tpu.memory_space<vmem>>, vector<1x128x128xbf16>
    %45 = vector.shape_cast %44 : vector<1x128x128xbf16> to vector<128x128xbf16>
    %cst_47 = arith.constant dense<0.000000e+00> : vector<33x128xf32>
    %46 = tpu.matmul %43, %45, %cst_47 {dimension_numbers = #tpu.dot_dimension_numbers<[1], [0], [0], [1], [0, 0, 1, 1], [], []>} : vector<33x128xbf16>, vector<128x128xbf16>, vector<33x128xf32> -> vector<33x128xf32>
    %47 = vector.broadcast %42 : vector<1x128xf32> to vector<33x128xf32>
    %48 = arith.addf %47, %46 : vector<33x128xf32>
    %c0_48 = arith.constant 0 : index
    %c0_49 = arith.constant 0 : index
    %49 = vector.load %arg8[%c0_48, %c0_49] : memref<34x128xbf16, #tpu.memory_space<vmem>>, vector<33x128xbf16>
    %c1_50 = arith.constant 1 : index
    %c0_51 = arith.constant 0 : index
    %c0_52 = arith.constant 0 : index
    %50 = vector.load %arg4[%c1_50, %c0_51, %c0_52] : memref<3x128x128xbf16, #tpu.memory_space<vmem>>, vector<1x128x128xbf16>
    %51 = vector.shape_cast %50 : vector<1x128x128xbf16> to vector<128x128xbf16>
    %cst_53 = arith.constant dense<0.000000e+00> : vector<33x128xf32>
    %52 = tpu.matmul %49, %51, %cst_53 {dimension_numbers = #tpu.dot_dimension_numbers<[1], [0], [0], [1], [0, 0, 1, 1], [], []>} : vector<33x128xbf16>, vector<128x128xbf16>, vector<33x128xf32> -> vector<33x128xf32>
    %53 = arith.addf %48, %52 : vector<33x128xf32>
    %c1_54 = arith.constant 1 : index
    %c0_55 = arith.constant 0 : index
    %54 = vector.load %arg9[%c1_54, %c0_55] : memref<34x128xbf16, #tpu.memory_space<vmem>>, vector<33x128xbf16>
    %c2 = arith.constant 2 : index
    %c0_56 = arith.constant 0 : index
    %c0_57 = arith.constant 0 : index
    %55 = vector.load %arg4[%c2, %c0_56, %c0_57] : memref<3x128x128xbf16, #tpu.memory_space<vmem>>, vector<1x128x128xbf16>
    %56 = vector.shape_cast %55 : vector<1x128x128xbf16> to vector<128x128xbf16>
    %cst_58 = arith.constant dense<0.000000e+00> : vector<33x128xf32>
    %57 = tpu.matmul %54, %56, %cst_58 {dimension_numbers = #tpu.dot_dimension_numbers<[1], [0], [0], [1], [0, 0, 1, 1], [], []>} : vector<33x128xbf16>, vector<128x128xbf16>, vector<33x128xf32> -> vector<33x128xf32>
    %58 = arith.addf %53, %57 : vector<33x128xf32>
    %c0_59 = arith.constant 0 : index
    %c0_60 = arith.constant 0 : index
    %59 = vector.load %arg8[%c0_59, %c0_60] : memref<34x128xbf16, #tpu.memory_space<vmem>>, vector<33x128xbf16>
    %c0_61 = arith.constant 0 : index
    %c0_62 = arith.constant 0 : index
    %c0_63 = arith.constant 0 : index
    %60 = vector.load %arg4[%c0_61, %c0_62, %c0_63] : memref<3x128x128xbf16, #tpu.memory_space<vmem>>, vector<1x128x128xbf16>
    %61 = vector.shape_cast %60 : vector<1x128x128xbf16> to vector<128x128xbf16>
    %cst_64 = arith.constant dense<0.000000e+00> : vector<33x128xf32>
    %62 = tpu.matmul %59, %61, %cst_64 {dimension_numbers = #tpu.dot_dimension_numbers<[1], [0], [0], [1], [0, 0, 1, 1], [], []>} : vector<33x128xbf16>, vector<128x128xbf16>, vector<33x128xf32> -> vector<33x128xf32>
    %63 = vector.broadcast %42 : vector<1x128xf32> to vector<33x128xf32>
    %64 = arith.addf %63, %62 : vector<33x128xf32>
    %c1_65 = arith.constant 1 : index
    %c0_66 = arith.constant 0 : index
    %65 = vector.load %arg9[%c1_65, %c0_66] : memref<34x128xbf16, #tpu.memory_space<vmem>>, vector<33x128xbf16>
    %c1_67 = arith.constant 1 : index
    %c0_68 = arith.constant 0 : index
    %c0_69 = arith.constant 0 : index
    %66 = vector.load %arg4[%c1_67, %c0_68, %c0_69] : memref<3x128x128xbf16, #tpu.memory_space<vmem>>, vector<1x128x128xbf16>
    %67 = vector.shape_cast %66 : vector<1x128x128xbf16> to vector<128x128xbf16>
    %cst_70 = arith.constant dense<0.000000e+00> : vector<33x128xf32>
    %68 = tpu.matmul %65, %67, %cst_70 {dimension_numbers = #tpu.dot_dimension_numbers<[1], [0], [0], [1], [0, 0, 1, 1], [], []>} : vector<33x128xbf16>, vector<128x128xbf16>, vector<33x128xf32> -> vector<33x128xf32>
    %69 = arith.addf %64, %68 : vector<33x128xf32>
    %c1_71 = arith.constant 1 : index
    %c0_72 = arith.constant 0 : index
    %70 = vector.load %arg8[%c1_71, %c0_72] : memref<34x128xbf16, #tpu.memory_space<vmem>>, vector<33x128xbf16>
    %c2_73 = arith.constant 2 : index
    %c0_74 = arith.constant 0 : index
    %c0_75 = arith.constant 0 : index
    %71 = vector.load %arg4[%c2_73, %c0_74, %c0_75] : memref<3x128x128xbf16, #tpu.memory_space<vmem>>, vector<1x128x128xbf16>
    %72 = vector.shape_cast %71 : vector<1x128x128xbf16> to vector<128x128xbf16>
    %cst_76 = arith.constant dense<0.000000e+00> : vector<33x128xf32>
    %73 = tpu.matmul %70, %72, %cst_76 {dimension_numbers = #tpu.dot_dimension_numbers<[1], [0], [0], [1], [0, 0, 1, 1], [], []>} : vector<33x128xbf16>, vector<128x128xbf16>, vector<33x128xf32> -> vector<33x128xf32>
    %74 = arith.addf %69, %73 : vector<33x128xf32>
    %75 = vector.extract_strided_slice %58 {offsets = [0, 0], sizes = [16, 128], strides = [1, 1]} : vector<33x128xf32> to vector<16x128xf32>
    %c0_77 = arith.constant 0 : index
    %c0_78 = arith.constant 0 : index
    %c0_79 = arith.constant 0 : index
    %c0_80 = arith.constant 0 : index
    %76 = vector.load %arg6[%c0_77, %c0_78, %c0_79, %c0_80] : memref<2x2x16x128xf32, #tpu.memory_space<vmem>>, vector<1x1x16x128xf32>
    %77 = vector.shape_cast %76 : vector<1x1x16x128xf32> to vector<16x128xf32>
    %78 = vector.shape_cast %75 : vector<16x128xf32> to vector<1x1x16x128xf32>
    tpu.vector_store %arg6[%c0_77, %c0_78, %c0_79, %c0_80], %78 {strides = array<i32>} : memref<2x2x16x128xf32, #tpu.memory_space<vmem>>, vector<1x1x16x128xf32>,
    %79 = vector.extract_strided_slice %74 {offsets = [0, 0], sizes = [16, 128], strides = [1, 1]} : vector<33x128xf32> to vector<16x128xf32>
    %c0_81 = arith.constant 0 : index
    %c1_82 = arith.constant 1 : index
    %c0_83 = arith.constant 0 : index
    %c0_84 = arith.constant 0 : index
    %80 = vector.load %arg6[%c0_81, %c1_82, %c0_83, %c0_84] : memref<2x2x16x128xf32, #tpu.memory_space<vmem>>, vector<1x1x16x128xf32>
    %81 = vector.shape_cast %80 : vector<1x1x16x128xf32> to vector<16x128xf32>
    %82 = vector.shape_cast %79 : vector<16x128xf32> to vector<1x1x16x128xf32>
    tpu.vector_store %arg6[%c0_81, %c1_82, %c0_83, %c0_84], %82 {strides = array<i32>} : memref<2x2x16x128xf32, #tpu.memory_space<vmem>>, vector<1x1x16x128xf32>,
    %83 = vector.extract_strided_slice %58 {offsets = [17, 0], sizes = [16, 128], strides = [1, 1]} : vector<33x128xf32> to vector<16x128xf32>
    %c1_85 = arith.constant 1 : index
    %c0_86 = arith.constant 0 : index
    %c0_87 = arith.constant 0 : index
    %c0_88 = arith.constant 0 : index
    %84 = vector.load %arg6[%c1_85, %c0_86, %c0_87, %c0_88] : memref<2x2x16x128xf32, #tpu.memory_space<vmem>>, vector<1x1x16x128xf32>
    %85 = vector.shape_cast %84 : vector<1x1x16x128xf32> to vector<16x128xf32>
    %86 = vector.shape_cast %83 : vector<16x128xf32> to vector<1x1x16x128xf32>
    tpu.vector_store %arg6[%c1_85, %c0_86, %c0_87, %c0_88], %86 {strides = array<i32>} : memref<2x2x16x128xf32, #tpu.memory_space<vmem>>, vector<1x1x16x128xf32>,
    %87 = vector.extract_strided_slice %74 {offsets = [17, 0], sizes = [16, 128], strides = [1, 1]} : vector<33x128xf32> to vector<16x128xf32>
    %c1_89 = arith.constant 1 : index
    %c1_90 = arith.constant 1 : index
    %c0_91 = arith.constant 0 : index
    %c0_92 = arith.constant 0 : index
    %88 = vector.load %arg6[%c1_89, %c1_90, %c0_91, %c0_92] : memref<2x2x16x128xf32, #tpu.memory_space<vmem>>, vector<1x1x16x128xf32>
    %89 = vector.shape_cast %88 : vector<1x1x16x128xf32> to vector<16x128xf32>
    %90 = vector.shape_cast %87 : vector<16x128xf32> to vector<1x1x16x128xf32>
    tpu.vector_store %arg6[%c1_89, %c1_90, %c0_91, %c0_92], %90 {strides = array<i32>} : memref<2x2x16x128xf32, #tpu.memory_space<vmem>>, vector<1x1x16x128xf32>,
    return
  }
  func.func @transform_0(%arg0: i32) -> (i32, i32, i32) {
    %c0_i32 = arith.constant 0 : i32
    %c0_i32_0 = arith.constant 0 : i32
    %c0_i32_1 = arith.constant 0 : i32
    return %arg0, %c0_i32, %c0_i32_0 : i32, i32, i32
  }
  func.func @transform_1(%arg0: i32) -> (i32, i32) {
    %c0_i32 = arith.constant 0 : i32
    %c0_i32_0 = arith.constant 0 : i32
    %c0_i32_1 = arith.constant 0 : i32
    return %c0_i32, %c0_i32_0 : i32, i32
  }
  func.func @transform_2(%arg0: i32) -> (i32, i32) {
    %c0_i32 = arith.constant 0 : i32
    %c0_i32_0 = arith.constant 0 : i32
    %c0_i32_1 = arith.constant 0 : i32
    return %c0_i32, %c0_i32_0 : i32, i32
  }
  func.func @transform_3(%arg0: i32) -> (i32, i32, i32) {
    %c0_i32 = arith.constant 0 : i32
    %c0_i32_0 = arith.constant 0 : i32
    %c0_i32_1 = arith.constant 0 : i32
    %c0_i32_2 = arith.constant 0 : i32
    return %c0_i32, %c0_i32_0, %c0_i32_1 : i32, i32, i32
  }
  func.func @transform_4(%arg0: i32) -> (i32, i32) {
    %c0_i32 = arith.constant 0 : i32
    %c0_i32_0 = arith.constant 0 : i32
    %c0_i32_1 = arith.constant 0 : i32
    return %c0_i32, %c0_i32_0 : i32, i32
  }
  func.func @transform_5(%arg0: i32) -> (i32, i32, i32, i32) {
    %c0_i32 = arith.constant 0 : i32
    %c0_i32_0 = arith.constant 0 : i32
    %c0_i32_1 = arith.constant 0 : i32
    %c0_i32_2 = arith.constant 0 : i32
    return %arg0, %c0_i32, %c0_i32_0, %c0_i32_1 : i32, i32, i32, i32
  }
}

module attributes {stable_mosaic.version = 11 : i64} {
  func.func @_fused_kernel(%arg0: i32, %arg1: memref<2x16x64xbf16, #tpu.memory_space<vmem>>, %arg2: memref<192x256xbf16, #tpu.memory_space<vmem>>, %arg3: memref<1x256xf32, #tpu.memory_space<vmem>>, %arg4: memref<3x128x128xbf16, #tpu.memory_space<vmem>>, %arg5: memref<1x128xf32, #tpu.memory_space<vmem>>, %arg6: memref<2x2x16x128xf32, #tpu.memory_space<vmem>>, %arg7: memref<32x192xbf16, #tpu.memory_space<vmem>>, %arg8: memref<34x128xbf16, #tpu.memory_space<vmem>>, %arg9: memref<34x128xbf16, #tpu.memory_space<vmem>>) attributes {dimension_semantics = [#tpu.dimension_semantics<parallel>], iteration_bounds = array<i64: 1>, scalar_prefetch = 0 : i64, scratch_operands = 3 : i64, tpu.core_type = #tpu.core_type<tc>, window_params = [{transform_indices = @transform_0, window_bounds = array<i64: 2, 16, 64>}, {pipeline_mode = #tpu.pipeline_mode<synchronous>, transform_indices = @transform_1, window_bounds = array<i64: 192, 256>}, {pipeline_mode = #tpu.pipeline_mode<synchronous>, transform_indices = @transform_2, window_bounds = array<i64: 1, 256>}, {pipeline_mode = #tpu.pipeline_mode<synchronous>, transform_indices = @transform_3, window_bounds = array<i64: 3, 128, 128>}, {pipeline_mode = #tpu.pipeline_mode<synchronous>, transform_indices = @transform_4, window_bounds = array<i64: 1, 128>}, {transform_indices = @transform_5, window_bounds = array<i64: 2, 2, 16, 128>}]} {
    %cst = arith.constant 0.000000e+00 : bf16
    %0 = vector.broadcast %cst : bf16 to vector<1x64xbf16>
    %cst_0 = arith.constant 0.000000e+00 : bf16
    %1 = vector.broadcast %cst_0 : bf16 to vector<1x128xbf16>
    %c0 = arith.constant 0 : index
    %c0_1 = arith.constant 0 : index
    %c0_2 = arith.constant 0 : index
    %2 = vector.load %arg1[%c0, %c0_1, %c0_2] : memref<2x16x64xbf16, #tpu.memory_space<vmem>>, vector<1x16x64xbf16>
    %3 = vector.shape_cast %2 : vector<1x16x64xbf16> to vector<16x64xbf16>
    %c0_3 = arith.constant 0 : index
    %c0_4 = arith.constant 0 : index
    %4 = vector.load %arg7[%c0_3, %c0_4] : memref<32x192xbf16, #tpu.memory_space<vmem>>, vector<1x64xbf16>
    tpu.vector_store %arg7[%c0_3, %c0_4], %0 {strides = array<i32>} : memref<32x192xbf16, #tpu.memory_space<vmem>>, vector<1x64xbf16>,
    %5 = vector.extract_strided_slice %3 {offsets = [0, 0], sizes = [15, 64], strides = [1, 1]} : vector<16x64xbf16> to vector<15x64xbf16>
    %c1 = arith.constant 1 : index
    %c0_5 = arith.constant 0 : index
    %6 = vector.load %arg7[%c1, %c0_5] : memref<32x192xbf16, #tpu.memory_space<vmem>>, vector<15x64xbf16>
    tpu.vector_store %arg7[%c1, %c0_5], %5 {strides = array<i32>} : memref<32x192xbf16, #tpu.memory_space<vmem>>, vector<15x64xbf16>,
    %c0_6 = arith.constant 0 : index
    %c64 = arith.constant 64 : index
    %7 = vector.load %arg7[%c0_6, %c64] : memref<32x192xbf16, #tpu.memory_space<vmem>>, vector<16x64xbf16>
    tpu.vector_store %arg7[%c0_6, %c64], %3 {strides = array<i32>} : memref<32x192xbf16, #tpu.memory_space<vmem>>, vector<16x64xbf16>,
    %8 = vector.extract_strided_slice %3 {offsets = [1, 0], sizes = [15, 64], strides = [1, 1]} : vector<16x64xbf16> to vector<15x64xbf16>
    %c0_7 = arith.constant 0 : index
    %c128 = arith.constant 128 : index
    %9 = vector.load %arg7[%c0_7, %c128] : memref<32x192xbf16, #tpu.memory_space<vmem>>, vector<15x64xbf16>
    tpu.vector_store %arg7[%c0_7, %c128], %8 {strides = array<i32>} : memref<32x192xbf16, #tpu.memory_space<vmem>>, vector<15x64xbf16>,
    %c15 = arith.constant 15 : index
    %c128_8 = arith.constant 128 : index
    %10 = vector.load %arg7[%c15, %c128_8] : memref<32x192xbf16, #tpu.memory_space<vmem>>, vector<1x64xbf16>
    tpu.vector_store %arg7[%c15, %c128_8], %0 {strides = array<i32>} : memref<32x192xbf16, #tpu.memory_space<vmem>>, vector<1x64xbf16>,
    %c1_9 = arith.constant 1 : index
    %c0_10 = arith.constant 0 : index
    %c0_11 = arith.constant 0 : index
    %11 = vector.load %arg1[%c1_9, %c0_10, %c0_11] : memref<2x16x64xbf16, #tpu.memory_space<vmem>>, vector<1x16x64xbf16>
    %12 = vector.shape_cast %11 : vector<1x16x64xbf16> to vector<16x64xbf16>
    %c16 = arith.constant 16 : index
    %c0_12 = arith.constant 0 : index
    %13 = vector.load %arg7[%c16, %c0_12] : memref<32x192xbf16, #tpu.memory_space<vmem>>, vector<1x64xbf16>
    tpu.vector_store %arg7[%c16, %c0_12], %0 {strides = array<i32>} : memref<32x192xbf16, #tpu.memory_space<vmem>>, vector<1x64xbf16>,
    %14 = vector.extract_strided_slice %12 {offsets = [0, 0], sizes = [15, 64], strides = [1, 1]} : vector<16x64xbf16> to vector<15x64xbf16>
    %c17 = arith.constant 17 : index
    %c0_13 = arith.constant 0 : index
    %15 = vector.load %arg7[%c17, %c0_13] : memref<32x192xbf16, #tpu.memory_space<vmem>>, vector<15x64xbf16>
    tpu.vector_store %arg7[%c17, %c0_13], %14 {strides = array<i32>} : memref<32x192xbf16, #tpu.memory_space<vmem>>, vector<15x64xbf16>,
    %c16_14 = arith.constant 16 : index
    %c64_15 = arith.constant 64 : index
    %16 = vector.load %arg7[%c16_14, %c64_15] : memref<32x192xbf16, #tpu.memory_space<vmem>>, vector<16x64xbf16>
    tpu.vector_store %arg7[%c16_14, %c64_15], %12 {strides = array<i32>} : memref<32x192xbf16, #tpu.memory_space<vmem>>, vector<16x64xbf16>,
    %17 = vector.extract_strided_slice %12 {offsets = [1, 0], sizes = [15, 64], strides = [1, 1]} : vector<16x64xbf16> to vector<15x64xbf16>
    %c16_16 = arith.constant 16 : index
    %c128_17 = arith.constant 128 : index
    %18 = vector.load %arg7[%c16_16, %c128_17] : memref<32x192xbf16, #tpu.memory_space<vmem>>, vector<15x64xbf16>
    tpu.vector_store %arg7[%c16_16, %c128_17], %17 {strides = array<i32>} : memref<32x192xbf16, #tpu.memory_space<vmem>>, vector<15x64xbf16>,
    %c31 = arith.constant 31 : index
    %c128_18 = arith.constant 128 : index
    %19 = vector.load %arg7[%c31, %c128_18] : memref<32x192xbf16, #tpu.memory_space<vmem>>, vector<1x64xbf16>
    tpu.vector_store %arg7[%c31, %c128_18], %0 {strides = array<i32>} : memref<32x192xbf16, #tpu.memory_space<vmem>>, vector<1x64xbf16>,
    %c0_19 = arith.constant 0 : index
    %c0_20 = arith.constant 0 : index
    %20 = vector.load %arg7[%c0_19, %c0_20] : memref<32x192xbf16, #tpu.memory_space<vmem>>, vector<32x192xbf16>
    %c0_21 = arith.constant 0 : index
    %c0_22 = arith.constant 0 : index
    %21 = vector.load %arg2[%c0_21, %c0_22] : memref<192x256xbf16, #tpu.memory_space<vmem>>, vector<192x256xbf16>
    %cst_23 = arith.constant dense<0.000000e+00> : vector<32x256xf32>
    %22 = tpu.matmul %20, %21, %cst_23 {dimension_numbers = #tpu.dot_dimension_numbers<[1], [0], [0], [1], [0, 0, 1, 1], [], []>} : vector<32x192xbf16>, vector<192x256xbf16>, vector<32x256xf32> -> vector<32x256xf32>
    %c0_24 = arith.constant 0 : index
    %c0_25 = arith.constant 0 : index
    %23 = vector.load %arg3[%c0_24, %c0_25] : memref<1x256xf32, #tpu.memory_space<vmem>>, vector<1x256xf32>
    %24 = vector.broadcast %23 : vector<1x256xf32> to vector<32x256xf32>
    %25 = arith.addf %22, %24 : vector<32x256xf32>
    %26 = vector.extract_strided_slice %25 {offsets = [0, 0], sizes = [16, 128], strides = [1, 1]} : vector<32x256xf32> to vector<16x128xf32>
    %27 = arith.truncf %26 : vector<16x128xf32> to vector<16x128xbf16>
    %c0_26 = arith.constant 0 : index
    %c0_27 = arith.constant 0 : index
    %28 = vector.load %arg8[%c0_26, %c0_27] : memref<34x128xbf16, #tpu.memory_space<vmem>>, vector<16x128xbf16>
    tpu.vector_store %arg8[%c0_26, %c0_27], %27 {strides = array<i32>} : memref<34x128xbf16, #tpu.memory_space<vmem>>, vector<16x128xbf16>,
    %c16_28 = arith.constant 16 : index
    %c0_29 = arith.constant 0 : index
    %29 = vector.load %arg8[%c16_28, %c0_29] : memref<34x128xbf16, #tpu.memory_space<vmem>>, vector<1x128xbf16>
    tpu.vector_store %arg8[%c16_28, %c0_29], %1 {strides = array<i32>} : memref<34x128xbf16, #tpu.memory_space<vmem>>, vector<1x128xbf16>,
    %c0_30 = arith.constant 0 : index
    %c0_31 = arith.constant 0 : index
    %30 = vector.load %arg9[%c0_30, %c0_31] : memref<34x128xbf16, #tpu.memory_space<vmem>>, vector<1x128xbf16>
    tpu.vector_store %arg9[%c0_30, %c0_31], %1 {strides = array<i32>} : memref<34x128xbf16, #tpu.memory_space<vmem>>, vector<1x128xbf16>,
    %31 = vector.extract_strided_slice %25 {offsets = [0, 128], sizes = [16, 128], strides = [1, 1]} : vector<32x256xf32> to vector<16x128xf32>
    %32 = arith.truncf %31 : vector<16x128xf32> to vector<16x128xbf16>
    %c1_32 = arith.constant 1 : index
    %c0_33 = arith.constant 0 : index
    %33 = vector.load %arg9[%c1_32, %c0_33] : memref<34x128xbf16, #tpu.memory_space<vmem>>, vector<16x128xbf16>
    tpu.vector_store %arg9[%c1_32, %c0_33], %32 {strides = array<i32>} : memref<34x128xbf16, #tpu.memory_space<vmem>>, vector<16x128xbf16>,
    %34 = vector.extract_strided_slice %25 {offsets = [16, 0], sizes = [16, 128], strides = [1, 1]} : vector<32x256xf32> to vector<16x128xf32>
    %35 = arith.truncf %34 : vector<16x128xf32> to vector<16x128xbf16>
    %c17_34 = arith.constant 17 : index
    %c0_35 = arith.constant 0 : index
    %36 = vector.load %arg8[%c17_34, %c0_35] : memref<34x128xbf16, #tpu.memory_space<vmem>>, vector<16x128xbf16>
    tpu.vector_store %arg8[%c17_34, %c0_35], %35 {strides = array<i32>} : memref<34x128xbf16, #tpu.memory_space<vmem>>, vector<16x128xbf16>,
    %c33 = arith.constant 33 : index
    %c0_36 = arith.constant 0 : index
    %37 = vector.load %arg8[%c33, %c0_36] : memref<34x128xbf16, #tpu.memory_space<vmem>>, vector<1x128xbf16>
    tpu.vector_store %arg8[%c33, %c0_36], %1 {strides = array<i32>} : memref<34x128xbf16, #tpu.memory_space<vmem>>, vector<1x128xbf16>,
    %c17_37 = arith.constant 17 : index
    %c0_38 = arith.constant 0 : index
    %38 = vector.load %arg9[%c17_37, %c0_38] : memref<34x128xbf16, #tpu.memory_space<vmem>>, vector<1x128xbf16>
    tpu.vector_store %arg9[%c17_37, %c0_38], %1 {strides = array<i32>} : memref<34x128xbf16, #tpu.memory_space<vmem>>, vector<1x128xbf16>,
    %39 = vector.extract_strided_slice %25 {offsets = [16, 128], sizes = [16, 128], strides = [1, 1]} : vector<32x256xf32> to vector<16x128xf32>
    %40 = arith.truncf %39 : vector<16x128xf32> to vector<16x128xbf16>
    %c18 = arith.constant 18 : index
    %c0_39 = arith.constant 0 : index
    %41 = vector.load %arg9[%c18, %c0_39] : memref<34x128xbf16, #tpu.memory_space<vmem>>, vector<16x128xbf16>
    tpu.vector_store %arg9[%c18, %c0_39], %40 {strides = array<i32>} : memref<34x128xbf16, #tpu.memory_space<vmem>>, vector<16x128xbf16>,
    %c0_40 = arith.constant 0 : index
    %c0_41 = arith.constant 0 : index
    %42 = vector.load %arg5[%c0_40, %c0_41] : memref<1x128xf32, #tpu.memory_space<vmem>>, vector<1x128xf32>
    %c0_42 = arith.constant 0 : index
    %c0_43 = arith.constant 0 : index
    %43 = vector.load %arg9[%c0_42, %c0_43] : memref<34x128xbf16, #tpu.memory_space<vmem>>, vector<33x128xbf16>
    %c0_44 = arith.constant 0 : index
    %c0_45 = arith.constant 0 : index
    %c0_46 = arith.constant 0 : index
    %44 = vector.load %arg4[%c0_44, %c0_45, %c0_46] : memref<3x128x128xbf16, #tpu.memory_space<vmem>>, vector<1x128x128xbf16>
    %45 = vector.shape_cast %44 : vector<1x128x128xbf16> to vector<128x128xbf16>
    %cst_47 = arith.constant dense<0.000000e+00> : vector<33x128xf32>
    %46 = tpu.matmul %43, %45, %cst_47 {dimension_numbers = #tpu.dot_dimension_numbers<[1], [0], [0], [1], [0, 0, 1, 1], [], []>} : vector<33x128xbf16>, vector<128x128xbf16>, vector<33x128xf32> -> vector<33x128xf32>
    %47 = vector.broadcast %42 : vector<1x128xf32> to vector<33x128xf32>
    %48 = arith.addf %47, %46 : vector<33x128xf32>
    %c0_48 = arith.constant 0 : index
    %c0_49 = arith.constant 0 : index
    %49 = vector.load %arg8[%c0_48, %c0_49] : memref<34x128xbf16, #tpu.memory_space<vmem>>, vector<33x128xbf16>
    %c1_50 = arith.constant 1 : index
    %c0_51 = arith.constant 0 : index
    %c0_52 = arith.constant 0 : index
    %50 = vector.load %arg4[%c1_50, %c0_51, %c0_52] : memref<3x128x128xbf16, #tpu.memory_space<vmem>>, vector<1x128x128xbf16>
    %51 = vector.shape_cast %50 : vector<1x128x128xbf16> to vector<128x128xbf16>
    %cst_53 = arith.constant dense<0.000000e+00> : vector<33x128xf32>
    %52 = tpu.matmul %49, %51, %cst_53 {dimension_numbers = #tpu.dot_dimension_numbers<[1], [0], [0], [1], [0, 0, 1, 1], [], []>} : vector<33x128xbf16>, vector<128x128xbf16>, vector<33x128xf32> -> vector<33x128xf32>
    %53 = arith.addf %48, %52 : vector<33x128xf32>
    %c1_54 = arith.constant 1 : index
    %c0_55 = arith.constant 0 : index
    %54 = vector.load %arg9[%c1_54, %c0_55] : memref<34x128xbf16, #tpu.memory_space<vmem>>, vector<33x128xbf16>
    %c2 = arith.constant 2 : index
    %c0_56 = arith.constant 0 : index
    %c0_57 = arith.constant 0 : index
    %55 = vector.load %arg4[%c2, %c0_56, %c0_57] : memref<3x128x128xbf16, #tpu.memory_space<vmem>>, vector<1x128x128xbf16>
    %56 = vector.shape_cast %55 : vector<1x128x128xbf16> to vector<128x128xbf16>
    %cst_58 = arith.constant dense<0.000000e+00> : vector<33x128xf32>
    %57 = tpu.matmul %54, %56, %cst_58 {dimension_numbers = #tpu.dot_dimension_numbers<[1], [0], [0], [1], [0, 0, 1, 1], [], []>} : vector<33x128xbf16>, vector<128x128xbf16>, vector<33x128xf32> -> vector<33x128xf32>
    %58 = arith.addf %53, %57 : vector<33x128xf32>
    %c0_59 = arith.constant 0 : index
    %c0_60 = arith.constant 0 : index
    %59 = vector.load %arg8[%c0_59, %c0_60] : memref<34x128xbf16, #tpu.memory_space<vmem>>, vector<33x128xbf16>
    %c0_61 = arith.constant 0 : index
    %c0_62 = arith.constant 0 : index
    %c0_63 = arith.constant 0 : index
    %60 = vector.load %arg4[%c0_61, %c0_62, %c0_63] : memref<3x128x128xbf16, #tpu.memory_space<vmem>>, vector<1x128x128xbf16>
    %61 = vector.shape_cast %60 : vector<1x128x128xbf16> to vector<128x128xbf16>
    %cst_64 = arith.constant dense<0.000000e+00> : vector<33x128xf32>
    %62 = tpu.matmul %59, %61, %cst_64 {dimension_numbers = #tpu.dot_dimension_numbers<[1], [0], [0], [1], [0, 0, 1, 1], [], []>} : vector<33x128xbf16>, vector<128x128xbf16>, vector<33x128xf32> -> vector<33x128xf32>
    %63 = vector.broadcast %42 : vector<1x128xf32> to vector<33x128xf32>
    %64 = arith.addf %63, %62 : vector<33x128xf32>
    %c1_65 = arith.constant 1 : index
    %c0_66 = arith.constant 0 : index
    %65 = vector.load %arg9[%c1_65, %c0_66] : memref<34x128xbf16, #tpu.memory_space<vmem>>, vector<33x128xbf16>
    %c1_67 = arith.constant 1 : index
    %c0_68 = arith.constant 0 : index
    %c0_69 = arith.constant 0 : index
    %66 = vector.load %arg4[%c1_67, %c0_68, %c0_69] : memref<3x128x128xbf16, #tpu.memory_space<vmem>>, vector<1x128x128xbf16>
    %67 = vector.shape_cast %66 : vector<1x128x128xbf16> to vector<128x128xbf16>
    %cst_70 = arith.constant dense<0.000000e+00> : vector<33x128xf32>
    %68 = tpu.matmul %65, %67, %cst_70 {dimension_numbers = #tpu.dot_dimension_numbers<[1], [0], [0], [1], [0, 0, 1, 1], [], []>} : vector<33x128xbf16>, vector<128x128xbf16>, vector<33x128xf32> -> vector<33x128xf32>
    %69 = arith.addf %64, %68 : vector<33x128xf32>
    %c1_71 = arith.constant 1 : index
    %c0_72 = arith.constant 0 : index
    %70 = vector.load %arg8[%c1_71, %c0_72] : memref<34x128xbf16, #tpu.memory_space<vmem>>, vector<33x128xbf16>
    %c2_73 = arith.constant 2 : index
    %c0_74 = arith.constant 0 : index
    %c0_75 = arith.constant 0 : index
    %71 = vector.load %arg4[%c2_73, %c0_74, %c0_75] : memref<3x128x128xbf16, #tpu.memory_space<vmem>>, vector<1x128x128xbf16>
    %72 = vector.shape_cast %71 : vector<1x128x128xbf16> to vector<128x128xbf16>
    %cst_76 = arith.constant dense<0.000000e+00> : vector<33x128xf32>
    %73 = tpu.matmul %70, %72, %cst_76 {dimension_numbers = #tpu.dot_dimension_numbers<[1], [0], [0], [1], [0, 0, 1, 1], [], []>} : vector<33x128xbf16>, vector<128x128xbf16>, vector<33x128xf32> -> vector<33x128xf32>
    %74 = arith.addf %69, %73 : vector<33x128xf32>
    %75 = vector.extract_strided_slice %58 {offsets = [0, 0], sizes = [16, 128], strides = [1, 1]} : vector<33x128xf32> to vector<16x128xf32>
    %c0_77 = arith.constant 0 : index
    %c0_78 = arith.constant 0 : index
    %c0_79 = arith.constant 0 : index
    %c0_80 = arith.constant 0 : index
    %76 = vector.load %arg6[%c0_77, %c0_78, %c0_79, %c0_80] : memref<2x2x16x128xf32, #tpu.memory_space<vmem>>, vector<1x1x16x128xf32>
    %77 = vector.shape_cast %76 : vector<1x1x16x128xf32> to vector<16x128xf32>
    %78 = vector.shape_cast %75 : vector<16x128xf32> to vector<1x1x16x128xf32>
    tpu.vector_store %arg6[%c0_77, %c0_78, %c0_79, %c0_80], %78 {strides = array<i32>} : memref<2x2x16x128xf32, #tpu.memory_space<vmem>>, vector<1x1x16x128xf32>,
    %79 = vector.extract_strided_slice %74 {offsets = [0, 0], sizes = [16, 128], strides = [1, 1]} : vector<33x128xf32> to vector<16x128xf32>
    %c0_81 = arith.constant 0 : index
    %c1_82 = arith.constant 1 : index
    %c0_83 = arith.constant 0 : index
    %c0_84 = arith.constant 0 : index
    %80 = vector.load %arg6[%c0_81, %c1_82, %c0_83, %c0_84] : memref<2x2x16x128xf32, #tpu.memory_space<vmem>>, vector<1x1x16x128xf32>
    %81 = vector.shape_cast %80 : vector<1x1x16x128xf32> to vector<16x128xf32>
    %82 = vector.shape_cast %79 : vector<16x128xf32> to vector<1x1x16x128xf32>
    tpu.vector_store %arg6[%c0_81, %c1_82, %c0_83, %c0_84], %82 {strides = array<i32>} : memref<2x2x16x128xf32, #tpu.memory_space<vmem>>, vector<1x1x16x128xf32>,
    %83 = vector.extract_strided_slice %58 {offsets = [17, 0], sizes = [16, 128], strides = [1, 1]} : vector<33x128xf32> to vector<16x128xf32>
    %c1_85 = arith.constant 1 : index
    %c0_86 = arith.constant 0 : index
    %c0_87 = arith.constant 0 : index
    %c0_88 = arith.constant 0 : index
    %84 = vector.load %arg6[%c1_85, %c0_86, %c0_87, %c0_88] : memref<2x2x16x128xf32, #tpu.memory_space<vmem>>, vector<1x1x16x128xf32>
    %85 = vector.shape_cast %84 : vector<1x1x16x128xf32> to vector<16x128xf32>
    %86 = vector.shape_cast %83 : vector<16x128xf32> to vector<1x1x16x128xf32>
    tpu.vector_store %arg6[%c1_85, %c0_86, %c0_87, %c0_88], %86 {strides = array<i32>} : memref<2x2x16x128xf32, #tpu.memory_space<vmem>>, vector<1x1x16x128xf32>,
    %87 = vector.extract_strided_slice %74 {offsets = [17, 0], sizes = [16, 128], strides = [1, 1]} : vector<33x128xf32> to vector<16x128xf32>
    %c1_89 = arith.constant 1 : index
    %c1_90 = arith.constant 1 : index
    %c0_91 = arith.constant 0 : index
    %c0_92 = arith.constant 0 : index
    %88 = vector.load %arg6[%c1_89, %c1_90, %c0_91, %c0_92] : memref<2x2x16x128xf32, #tpu.memory_space<vmem>>, vector<1x1x16x128xf32>
    %89 = vector.shape_cast %88 : vector<1x1x16x128xf32> to vector<16x128xf32>
    %90 = vector.shape_cast %87 : vector<16x128xf32> to vector<1x1x16x128xf32>
    tpu.vector_store %arg6[%c1_89, %c1_90, %c0_91, %c0_92], %90 {strides = array<i32>} : memref<2x2x16x128xf32, #tpu.memory_space<vmem>>, vector<1x1x16x128xf32>,
    return
  }
  func.func @transform_0(%arg0: i32) -> (i32, i32, i32) {
    %c0_i32 = arith.constant 0 : i32
    %c0_i32_0 = arith.constant 0 : i32
    %c0_i32_1 = arith.constant 0 : i32
    return %arg0, %c0_i32, %c0_i32_0 : i32, i32, i32
  }
  func.func @transform_1(%arg0: i32) -> (i32, i32) {
    %c0_i32 = arith.constant 0 : i32
    %c0_i32_0 = arith.constant 0 : i32
    %c0_i32_1 = arith.constant 0 : i32
    return %c0_i32, %c0_i32_0 : i32, i32
  }
  func.func @transform_2(%arg0: i32) -> (i32, i32) {
    %c0_i32 = arith.constant 0 : i32
    %c0_i32_0 = arith.constant 0 : i32
    %c0_i32_1 = arith.constant 0 : i32
    return %c0_i32, %c0_i32_0 : i32, i32
  }
  func.func @transform_3(%arg0: i32) -> (i32, i32, i32) {
    %c0_i32 = arith.constant 0 : i32
    %c0_i32_0 = arith.constant 0 : i32
    %c0_i32_1 = arith.constant 0 : i32
    %c0_i32_2 = arith.constant 0 : i32
    return %c0_i32, %c0_i32_0, %c0_i32_1 : i32, i32, i32
  }
  func.func @transform_4(%arg0: i32) -> (i32, i32) {
    %c0_i32 = arith.constant 0 : i32
    %c0_i32_0 = arith.constant 0 : i32
    %c0_i32_1 = arith.constant 0 : i32
    return %c0_i32, %c0_i32_0 : i32, i32
  }
  func.func @transform_5(%arg0: i32) -> (i32, i32, i32, i32) {
    %c0_i32 = arith.constant 0 : i32
    %c0_i32_0 = arith.constant 0 : i32
    %c0_i32_1 = arith.constant 0 : i32
    %c0_i32_2 = arith.constant 0 : i32
    return %arg0, %c0_i32, %c0_i32_0, %c0_i32_1 : i32, i32, i32, i32
  }
}

</mosaic_0001>

<llo_original>
// kernel: tpu_custom_call.1
$region0: #{tpu_custom_call.1}
  #allocation0 [shape = 'u32[]', space=smem, size = 0x4, offset = 0x4, fixed_abs, tag = 'smem constant byte address 0x4 - core index']
  #allocation1 [shape = 'u32[72,128]{1,0:T(1,128)}', space=vmem, size = 0x9000, scoped, tag = 'internal scratch']
  #allocation2 [shape = 'bf16[32,192]{1,0:T(8,128)(2,1)}', space=vmem, size = 0x4000, scoped, tag = 'scratch operand']
  #allocation3 [shape = 'bf16[34,128]{1,0:T(8,128)(2,1)}', space=vmem, size = 0x2800, scoped, tag = 'scratch operand']
  #allocation4 [shape = 'bf16[34,128]{1,0:T(8,128)(2,1)}', space=vmem, size = 0x2800, scoped, tag = 'scratch operand']
  %s0 = inlined_call_operand.hbm [shape: bf16[2,16,64], index: 0, kind: input, shape index: {}]
  %s1 = inlined_call_operand.hbm [shape: bf16[192,256], index: 1, kind: input, shape index: {}]
  %s2 = inlined_call_operand.hbm [shape: f32[1,256], index: 2, kind: input, shape index: {}]
  %s3 = inlined_call_operand.hbm [shape: bf16[3,128,128], index: 3, kind: input, shape index: {}]
  %s4 = inlined_call_operand.vmem [shape: f32[1,128], index: 4, kind: input, shape index: {}]
  %s5 = inlined_call_operand.hbm [shape: f32[2,2,16,128], index: 5, kind: output, shape index: {}]
  %s6 = sld [smem:[#allocation0]]
  $region46: #{tpu_custom_call.1} parent=0
    _
  %s8 = ssub.s32 1, %s6
  %s9 = scalar_select 0, %s8, %s6
  $region1: #{tpu_custom_call.1} parent=0
    #allocation5 [shape = 'u8[8192]{0}', space=vmem, size = 0x2000, scoped, tag = 'input window, operand 0, single buffered']
    #allocation6 [shape = 's32[1]{0}', space=sflag, size = 0x4, scoped, tag = 'scoped memory for tpu_custom_call.1']
    #allocation7 [shape = 's32[1]{0}', space=sflag, size = 0x4, scoped, tag = 'scoped memory for tpu_custom_call.1']
    #allocation8 [shape = 'u8[98304]{0}', space=vmem, size = 0x18000, scoped, tag = 'input window, operand 1, single buffered']
    #allocation9 [shape = 's32[1]{0}', space=sflag, size = 0x4, scoped, tag = 'scoped memory for tpu_custom_call.1']
    #allocation10 [shape = 'u8[1024]{0}', space=vmem, size = 0x400, scoped, tag = 'input window, operand 2, single buffered']
    #allocation11 [shape = 'u8[98304]{0}', space=vmem, size = 0x18000, scoped, tag = 'input window, operand 3, single buffered']
    #allocation12 [shape = 's32[1]{0}', space=sflag, size = 0x4, scoped, tag = 'scoped memory for tpu_custom_call.1']
    #allocation13 [shape = 'u8[32768]{0}', space=vmem, size = 0x8000, scoped, tag = 'output window, operand 0, single buffered']
    %10 = vsyncpa [#allocation6], 0
    %11 = vsyncpa [#allocation9], 0
    %12 = vsyncpa [#allocation12], 0
    %13 = vsyncpa [#allocation7], 0
    // Predicated region
    $region2: #{tpu_custom_call.1} parent=1 // pred_check
      _
    $region3: #{tpu_custom_call.1} parent=1 // pred_check_branch
      %15 = sbr.rel (0) target = $region5
    $region4: #{tpu_custom_call.1} parent=1 // pred_region
      %17 = vsyncadd [#allocation6], 0
      %s18 = sshll.u32 %s0, 4
      %s19 = int_to_ptr.hbm [resolvable:$true] %s18
      %s20 = sshll.u32 [#allocation5], 4
      %s21 = int_to_ptr.vmem [resolvable:$true] %s20
      %26 = dma.hbm_to_vmem [thread:$0]  %s19, 256, %s21, [#allocation6], 64, 64, 4
    $region5: #{tpu_custom_call.1} parent=1 // pred_fallthru
      _
    // Predicated region
    $region6: #{tpu_custom_call.1} parent=1 // pred_check
      _
    $region7: #{tpu_custom_call.1} parent=1 // pred_check_branch
      %28 = sbr.rel (0) target = $region9
    $region8: #{tpu_custom_call.1} parent=1 // pred_region
      %30 = vsyncadd [#allocation9], 0
      %s31 = sshll.u32 %s1, 4
      %s32 = int_to_ptr.hbm [resolvable:$true] %s31
      %s33 = sshll.u32 [#allocation8], 4
      %s34 = int_to_ptr.vmem [resolvable:$true] %s33
      %39 = dma.hbm_to_vmem [thread:$0]  %s32, 3072, %s34, [#allocation9], 128, 128, 8
    $region9: #{tpu_custom_call.1} parent=1 // pred_fallthru
      _
    // Predicated region
    $region10: #{tpu_custom_call.1} parent=1 // pred_check
      _
    $region11: #{tpu_custom_call.1} parent=1 // pred_check_branch
      %41 = sbr.rel (0) target = $region13
    $region12: #{tpu_custom_call.1} parent=1 // pred_region
      %43 = vsyncadd [#allocation9], 0
      %s45 = sshll.u32 %s2, 4
      %s46 = int_to_ptr.hbm [resolvable:$true] %s45
      %s47 = sshll.u32 [#allocation10], 4
      %s48 = int_to_ptr.vmem [resolvable:$true] %s47
      %50 = dma.hbm_to_vmem [thread:$0]  %s46, 32, %s48, [#allocation9]
    $region13: #{tpu_custom_call.1} parent=1 // pred_fallthru
      _
    // Predicated region
    $region14: #{tpu_custom_call.1} parent=1 // pred_check
      _
    $region15: #{tpu_custom_call.1} parent=1 // pred_check_branch
      %52 = sbr.rel (0) target = $region17
    $region16: #{tpu_custom_call.1} parent=1 // pred_region
      %54 = vsyncadd [#allocation12], 0
      %s55 = sshll.u32 %s3, 4
      %s56 = int_to_ptr.hbm [resolvable:$true] %s55
      %s57 = sshll.u32 [#allocation11], 4
      %s58 = int_to_ptr.vmem [resolvable:$true] %s57
      %63 = dma.hbm_to_vmem [thread:$0]  %s56, 3072, %s58, [#allocation12], 64, 64, 4
    $region17: #{tpu_custom_call.1} parent=1 // pred_fallthru
      _
    // Predicated region
    $region18: #{tpu_custom_call.1} parent=1 // pred_check
      _
    $region19: #{tpu_custom_call.1} parent=1 // pred_check_branch
      %65 = sbr.rel (0) target = $region21
    $region20: #{tpu_custom_call.1} parent=1 // pred_region
      _
    $region21: #{tpu_custom_call.1} parent=1 // pred_fallthru
      _
    // Predicated region
    $region22: #{tpu_custom_call.1} parent=1 // pred_check
      _
    $region23: #{tpu_custom_call.1} parent=1 // pred_check_branch
      %67 = sbr.rel (0) target = $region25
    $region24: #{tpu_custom_call.1} parent=1 // pred_region
      %69 = dma.done [#allocation6], 256
    $region25: #{tpu_custom_call.1} parent=1 // pred_fallthru
      _
    // Predicated region
    $region26: #{tpu_custom_call.1} parent=1 // pred_check
      _
    $region27: #{tpu_custom_call.1} parent=1 // pred_check_branch
      %71 = sbr.rel (0) target = $region29
    $region28: #{tpu_custom_call.1} parent=1 // pred_region
      %73 = dma.done [#allocation9], 3072
    $region29: #{tpu_custom_call.1} parent=1 // pred_fallthru
      _
    // Predicated region
    $region30: #{tpu_custom_call.1} parent=1 // pred_check
      _
    $region31: #{tpu_custom_call.1} parent=1 // pred_check_branch
      %75 = sbr.rel (0) target = $region33
    $region32: #{tpu_custom_call.1} parent=1 // pred_region
      %77 = dma.done [#allocation9], 32
    $region33: #{tpu_custom_call.1} parent=1 // pred_fallthru
      _
    // Predicated region
    $region34: #{tpu_custom_call.1} parent=1 // pred_check
      _
    $region35: #{tpu_custom_call.1} parent=1 // pred_check_branch
      %79 = sbr.rel (0) target = $region37
    $region36: #{tpu_custom_call.1} parent=1 // pred_region
      %81 = dma.done [#allocation12], 3072
    $region37: #{tpu_custom_call.1} parent=1 // pred_fallthru
      _
    %v83 = vld [vmem:[#allocation5] sm:$0xf]
    %v84 = vld [vmem:[#allocation5 + $0x4] sm:$0xf]
    %vm85 = vcmask 516096
    %vm86 = vsmask.f32 256
    %vm87 = vmand %vm85, %vm86
    %v88 = vld [vmem:[#allocation2] sm:$0x1]
    %v89 = vsel %vm87, 0, %v88
    %90 = vst [vmem:[#allocation2] sm:$0x1] %v89
    %vm91 = vsmask.f32 4368
    %vm92 = vmor %vm86, %vm91
    %v94 = vshrl.u32 %v83, 16
    %v96 = vrot.slane %v94, 7
    %v97 = vshll.u32 %v83, 16
    %v99 = vor.u32 %v96, %v97
    %v100 = vrot.slane %v96, 4
    %v102 = vshrl.u32 %v84, 16
    %v104 = vrot.slane %v102, 7
    %v105 = vshll.u32 %v84, 16
    %v107 = vor.u32 %v104, %v105
    %v108 = vsel %vm92, %v100, %v107
    %vm111 = vcmask 519168
    %vm112 = vsmask.f32 7938
    %vm113 = vmand %vm111, %vm112
    %v114 = vld [vmem:[#allocation2] sm:$0xf]
    %v115 = vsel %vm113, %v99, %v114
    %116 = vst [vmem:[#allocation2] sm:$0xf] %v115
    %vm117 = vcmask 519168
    %118 = vst.msk [vmem:[#allocation2 + $0x8] sm:$0xf] %vm117, %v108
    %121 = vrot.lane.b32.xlu0 %v83, 64
    %v122 = vpop.permute.xlu0 %121
    %123 = vrot.lane.b32.xlu0 %v84, 64
    %v124 = vpop.permute.xlu0 %123
    %vm127 = vcmask 1043968
    %128 = vst.msk [vmem:[#allocation2] sm:$0xf] %vm127, %v122
    %129 = vst.msk [vmem:[#allocation2 + $0x8] sm:$0xf] %vm127, %v124
    %vm130 = vsmask.f32 3328
    %vm131 = vsmask.f32 7440
    %vm132 = vmor %vm130, %vm131
    %v133 = vrot.slane %v94, 4
    %v134 = vrot.slane %v97, 5
    %v135 = vor.u32 %v133, %v134
    %v136 = vrot.slane %v135, 4
    %v137 = vrot.slane %v105, 5
    %v138 = vsel %vm132, %v136, %v137
    %v139 = vrot.slane %v102, 4
    %v140 = vor.u32 %v139, %v137
    %v141 = vrot.slane %v140, 4
    %144 = vst.msk [vmem:[#allocation2 + $0x4] sm:$0xf] %vm117, %v138
    %vm145 = vmand %vm111, %vm130
    %v146 = vld [vmem:[#allocation2 + $0xc] sm:$0xf]
    %v147 = vsel %vm145, %v141, %v146
    %148 = vst [vmem:[#allocation2 + $0xc] sm:$0xf] %v147
    %vm149 = vcmask 519171
    %vm150 = vsmask.f32 7950
    %vm151 = vmand %vm149, %vm150
    %v152 = vld [vmem:[#allocation2 + $0xc] sm:$0x8]
    %v153 = vsel %vm151, 0, %v152
    %154 = vst [vmem:[#allocation2 + $0xc] sm:$0x8] %v153
    %s155 = scalar_lea.vmem [#allocation5], 8
    %v156 = vld [vmem:[%s155] sm:$0xf]
    %v157 = vld [vmem:[%s155 + $0x4] sm:$0xf]
    %v158 = vld [vmem:[#allocation2 + $0x10] sm:$0x1]
    %v159 = vsel %vm87, 0, %v158
    %160 = vst [vmem:[#allocation2 + $0x10] sm:$0x1] %v159
    %v162 = vshrl.u32 %v156, 16
    %v164 = vrot.slane %v162, 7
    %v165 = vshll.u32 %v156, 16
    %v167 = vor.u32 %v164, %v165
    %v168 = vrot.slane %v164, 4
    %v170 = vshrl.u32 %v157, 16
    %v172 = vrot.slane %v170, 7
    %v173 = vshll.u32 %v157, 16
    %v175 = vor.u32 %v172, %v173
    %v176 = vsel %vm92, %v168, %v175
    %v179 = vld [vmem:[#allocation2 + $0x10] sm:$0xf]
    %v180 = vsel %vm113, %v167, %v179
    %181 = vst [vmem:[#allocation2 + $0x10] sm:$0xf] %v180
    %182 = vst.msk [vmem:[#allocation2 + $0x18] sm:$0xf] %vm117, %v176
    %185 = vrot.lane.b32.xlu0 %v156, 64
    %v186 = vpop.permute.xlu0 %185
    %187 = vrot.lane.b32.xlu0 %v157, 64
    %v188 = vpop.permute.xlu0 %187
    %191 = vst.msk [vmem:[#allocation2 + $0x10] sm:$0xf] %vm127, %v186
    %192 = vst.msk [vmem:[#allocation2 + $0x18] sm:$0xf] %vm127, %v188
    %v193 = vrot.slane %v162, 4
    %v194 = vrot.slane %v165, 5
    %v195 = vor.u32 %v193, %v194
    %v196 = vrot.slane %v195, 4
    %v197 = vrot.slane %v173, 5
    %v198 = vsel %vm132, %v196, %v197
    %v199 = vrot.slane %v170, 4
    %v200 = vor.u32 %v199, %v197
    %v201 = vrot.slane %v200, 4
    %204 = vst.msk [vmem:[#allocation2 + $0x14] sm:$0xf] %vm117, %v198
    %v205 = vld [vmem:[#allocation2 + $0x1c] sm:$0xf]
    %v206 = vsel %vm145, %v201, %v205
    %207 = vst [vmem:[#allocation2 + $0x1c] sm:$0xf] %v206
    %v208 = vld [vmem:[#allocation2 + $0x1c] sm:$0x8]
    %v209 = vsel %vm151, 0, %v208
    %210 = vst [vmem:[#allocation2 + $0x1c] sm:$0x8] %v209
    %v211 = vld [vmem:[#allocation2] sm:$0xff]
    %v212 = vld [vmem:[#allocation2 + $0x8] sm:$0xff]
    %v213 = vld [vmem:[#allocation2 + $0x10] sm:$0xff]
    %v214 = vld [vmem:[#allocation2 + $0x18] sm:$0xff]
    %v215 = vld [vmem:[#allocation8] sm:$0xff]
    %v216 = vld [vmem:[#allocation8 + $0x8] sm:$0xff]
    %v217 = vld [vmem:[#allocation8 + $0x10] sm:$0xff]
    %v218 = vld [vmem:[#allocation8 + $0x18] sm:$0xff]
    %v219 = vld [vmem:[#allocation8 + $0x20] sm:$0xff]
    %v220 = vld [vmem:[#allocation8 + $0x28] sm:$0xff]
    %v221 = vld [vmem:[#allocation8 + $0x30] sm:$0xff]
    %v222 = vld [vmem:[#allocation8 + $0x38] sm:$0xff]
    %v223 = vld [vmem:[#allocation8 + $0x40] sm:$0xff]
    %v224 = vld [vmem:[#allocation8 + $0x48] sm:$0xff]
    %v225 = vld [vmem:[#allocation8 + $0x50] sm:$0xff]
    %v226 = vld [vmem:[#allocation8 + $0x58] sm:$0xff]
    %v227 = vld [vmem:[#allocation8 + $0x60] sm:$0xff]
    %v228 = vld [vmem:[#allocation8 + $0x68] sm:$0xff]
    %v229 = vld [vmem:[#allocation8 + $0x70] sm:$0xff]
    %v230 = vld [vmem:[#allocation8 + $0x78] sm:$0xff]
    %v231 = vld [vmem:[#allocation8 + $0x80] sm:$0xff]
    %v232 = vld [vmem:[#allocation8 + $0x88] sm:$0xff]
    %v233 = vld [vmem:[#allocation8 + $0x90] sm:$0xff]
    %v234 = vld [vmem:[#allocation8 + $0x98] sm:$0xff]
    %v235 = vld [vmem:[#allocation8 + $0xa0] sm:$0xff]
    %v236 = vld [vmem:[#allocation8 + $0xa8] sm:$0xff]
    %v237 = vld [vmem:[#allocation8 + $0xb0] sm:$0xff]
    %v238 = vld [vmem:[#allocation8 + $0xb8] sm:$0xff]
    %v239 = vld [vmem:[#allocation10] sm:$0x3]
    %v241 = vperm.slane %v239, 0
    %v242 = vperm.slane %v239, 1
    %v249 = vunpack.c.l.b16 %v211
    %v250 = vunpack.c.h.b16 %v211
    %v251 = vunpack.c.l.b16 %v212
    %v252 = vunpack.c.h.b16 %v212
    %v253 = vunpack.c.l.b16 %v213
    %v254 = vunpack.c.h.b16 %v213
    %v255 = vunpack.c.l.b16 %v214
    %v256 = vunpack.c.h.b16 %v214
    %v257 = vpack.c.b16 %v251, %v249
    %v258 = vpack.c.b16 %v252, %v250
    %v259 = vpack.c.b16 %v255, %v253
    %v260 = vpack.c.b16 %v256, %v254
    %v287 = vunpack.c.l.b16 %v215
    %v288 = vunpack.c.h.b16 %v215
    %v289 = vunpack.c.l.b16 %v216
    %v290 = vunpack.c.h.b16 %v216
    %v291 = vunpack.c.l.b16 %v217
    %v292 = vunpack.c.h.b16 %v217
    %v293 = vunpack.c.l.b16 %v218
    %v294 = vunpack.c.h.b16 %v218
    %v295 = vunpack.c.l.b16 %v219
    %v296 = vunpack.c.h.b16 %v219
    %v297 = vunpack.c.l.b16 %v220
    %v298 = vunpack.c.h.b16 %v220
    %v299 = vunpack.c.l.b16 %v221
    %v300 = vunpack.c.h.b16 %v221
    %v301 = vunpack.c.l.b16 %v222
    %v302 = vunpack.c.h.b16 %v222
    %v303 = vunpack.c.l.b16 %v223
    %v304 = vunpack.c.h.b16 %v223
    %v305 = vunpack.c.l.b16 %v224
    %v306 = vunpack.c.h.b16 %v224
    %v307 = vunpack.c.l.b16 %v225
    %v308 = vunpack.c.h.b16 %v225
    %v309 = vunpack.c.l.b16 %v226
    %v310 = vunpack.c.h.b16 %v226
    %v311 = vunpack.c.l.b16 %v227
    %v312 = vunpack.c.h.b16 %v227
    %v313 = vunpack.c.l.b16 %v228
    %v314 = vunpack.c.h.b16 %v228
    %v315 = vunpack.c.l.b16 %v229
    %v316 = vunpack.c.h.b16 %v229
    %v317 = vunpack.c.l.b16 %v230
    %v318 = vunpack.c.h.b16 %v230
    %v319 = vunpack.c.l.b16 %v231
    %v320 = vunpack.c.h.b16 %v231
    %v321 = vunpack.c.l.b16 %v232
    %v322 = vunpack.c.h.b16 %v232
    %v323 = vunpack.c.l.b16 %v233
    %v324 = vunpack.c.h.b16 %v233
    %v325 = vunpack.c.l.b16 %v234
    %v326 = vunpack.c.h.b16 %v234
    %v327 = vunpack.c.l.b16 %v235
    %v328 = vunpack.c.h.b16 %v235
    %v329 = vunpack.c.l.b16 %v236
    %v330 = vunpack.c.h.b16 %v236
    %v331 = vunpack.c.l.b16 %v237
    %v332 = vunpack.c.h.b16 %v237
    %v333 = vunpack.c.l.b16 %v238
    %v334 = vunpack.c.h.b16 %v238
    %v335 = vpack.c.b16 %v289, %v287
    %v336 = vpack.c.b16 %v290, %v288
    %v337 = vpack.c.b16 %v293, %v291
    %v338 = vpack.c.b16 %v294, %v292
    %v339 = vpack.c.b16 %v297, %v295
    %v340 = vpack.c.b16 %v298, %v296
    %v341 = vpack.c.b16 %v301, %v299
    %v342 = vpack.c.b16 %v302, %v300
    %v343 = vpack.c.b16 %v305, %v303
    %v344 = vpack.c.b16 %v306, %v304
    %v345 = vpack.c.b16 %v309, %v307
    %v346 = vpack.c.b16 %v310, %v308
    %v347 = vpack.c.b16 %v313, %v311
    %v348 = vpack.c.b16 %v314, %v312
    %v349 = vpack.c.b16 %v317, %v315
    %v350 = vpack.c.b16 %v318, %v316
    %v351 = vpack.c.b16 %v321, %v319
    %v352 = vpack.c.b16 %v322, %v320
    %v353 = vpack.c.b16 %v325, %v323
    %v354 = vpack.c.b16 %v326, %v324
    %v355 = vpack.c.b16 %v329, %v327
    %v356 = vpack.c.b16 %v330, %v328
    %v357 = vpack.c.b16 %v333, %v331
    %v358 = vpack.c.b16 %v334, %v332
    %vm383 = vcmask 523264
    %v385 = vsel %vm383, %v258, 0
    %v388 = vsel %vm383, %v260, 0
    %390 = vmatpush.bf16.msra.mxu0 %v349
    %391 = vmatpush.bf16.msra.mxu0 %v347
    %392 = vmatpush.bf16.msra.mxu0 %v345
    %393 = vmatpush.bf16.msra.mxu0 %v343
    %394 = vmatpush.bf16.msra.mxu0 %v341
    %395 = vmatpush.bf16.msra.mxu0 %v339
    %396 = vmatpush.bf16.msra.mxu0 %v337
    %397 = vmatpush.bf16.msra.mxu0 %v335
    %398 = vmatmul.bf16.gmra.mxu0 %v257
    %v399 = vpop.f32.mrf.mxu0
    %v400 = vadd.f32 %v241, %v399
    %v401 = vpop.f32.mrf.mxu0
    %v402 = vadd.f32 %v241, %v401
    %403 = vmatmul.bf16.gmra.mxu0 %v259
    %v404 = vpop.f32.mrf.mxu0
    %v405 = vadd.f32 %v241, %v404
    %v406 = vpop.f32.mrf.mxu0
    %v407 = vadd.f32 %v241, %v406
    %408 = vdwg.mxu0
    %409 = vmatpush.bf16.msra.mxu0 0
    %410 = vmatpush.bf16.msra.mxu0 0
    %411 = vmatpush.bf16.msra.mxu0 0
    %412 = vmatpush.bf16.msra.mxu0 0
    %413 = vmatpush.bf16.msra.mxu0 %v357
    %414 = vmatpush.bf16.msra.mxu0 %v355
    %415 = vmatpush.bf16.msra.mxu0 %v353
    %416 = vmatpush.bf16.msra.mxu0 %v351
    %417 = vmatmul.bf16.gmra.mxu0 %v385
    %v418 = vpop.f32.mrf.mxu0
    %v419 = vadd.f32 %v400, %v418
    %v420 = vpop.f32.mrf.mxu0
    %v421 = vadd.f32 %v402, %v420
    %422 = vmatmul.bf16.gmra.mxu0 %v388
    %v423 = vpop.f32.mrf.mxu0
    %v424 = vadd.f32 %v405, %v423
    %v425 = vpop.f32.mrf.mxu0
    %v426 = vadd.f32 %v407, %v425
    %427 = vdwg.mxu0
    %428 = vmatpush.bf16.msra.mxu0 %v350
    %429 = vmatpush.bf16.msra.mxu0 %v348
    %430 = vmatpush.bf16.msra.mxu0 %v346
    %431 = vmatpush.bf16.msra.mxu0 %v344
    %432 = vmatpush.bf16.msra.mxu0 %v342
    %433 = vmatpush.bf16.msra.mxu0 %v340
    %434 = vmatpush.bf16.msra.mxu0 %v338
    %435 = vmatpush.bf16.msra.mxu0 %v336
    %436 = vmatmul.bf16.gmra.mxu0 %v257
    %v437 = vpop.f32.mrf.mxu0
    %v438 = vadd.f32 %v242, %v437
    %v439 = vpop.f32.mrf.mxu0
    %v440 = vadd.f32 %v242, %v439
    %441 = vmatmul.bf16.gmra.mxu0 %v259
    %v442 = vpop.f32.mrf.mxu0
    %v443 = vadd.f32 %v242, %v442
    %v444 = vpop.f32.mrf.mxu0
    %v445 = vadd.f32 %v242, %v444
    %446 = vdwg.mxu0
    %447 = vmatpush.bf16.msra.mxu0 0
    %448 = vmatpush.bf16.msra.mxu0 0
    %449 = vmatpush.bf16.msra.mxu0 0
    %450 = vmatpush.bf16.msra.mxu0 0
    %451 = vmatpush.bf16.msra.mxu0 %v358
    %452 = vmatpush.bf16.msra.mxu0 %v356
    %453 = vmatpush.bf16.msra.mxu0 %v354
    %454 = vmatpush.bf16.msra.mxu0 %v352
    %455 = vmatmul.bf16.gmra.mxu0 %v385
    %v456 = vpop.f32.mrf.mxu0
    %v457 = vadd.f32 %v438, %v456
    %v458 = vpop.f32.mrf.mxu0
    %v459 = vadd.f32 %v440, %v458
    %460 = vmatmul.bf16.gmra.mxu0 %v388
    %v461 = vpop.f32.mrf.mxu0
    %v462 = vadd.f32 %v443, %v461
    %v463 = vpop.f32.mrf.mxu0
    %v464 = vadd.f32 %v445, %v463
    %465 = vdwg.mxu0
    %v466 = vpack.c.bf16 %v419, %v419
    %v467 = vpack.c.bf16 %v421, %v421
    %468 = vst [vmem:[#allocation3] sm:$0xf] %v466
    %469 = vst [vmem:[#allocation3 + $0x4] sm:$0xf] %v467
    %vm470 = vcmask 1040384
    %vm471 = vmand %vm470, %vm86
    %v472 = vld [vmem:[#allocation3 + $0x8] sm:$0x1]
    %v473 = vsel %vm471, 0, %v472
    %474 = vst [vmem:[#allocation3 + $0x8] sm:$0x1] %v473
    %v475 = vld [vmem:[#allocation4] sm:$0x1]
    %v476 = vsel %vm471, 0, %v475
    %477 = vst [vmem:[#allocation4] sm:$0x1] %v476
    %v478 = vpack.c.bf16 %v457, %v457
    %v479 = vpack.c.bf16 %v459, %v459
    %v481 = vshrl.u32 %v478, 16
    %v483 = vrot.slane %v481, 7
    %v484 = vshll.u32 %v478, 16
    %v486 = vor.u32 %v483, %v484
    %v487 = vrot.slane %v483, 4
    %v489 = vshrl.u32 %v479, 16
    %v491 = vrot.slane %v489, 7
    %v492 = vshll.u32 %v479, 16
    %v494 = vor.u32 %v491, %v492
    %v495 = vsel %vm92, %v487, %v494
    %v496 = vrot.slane %v491, 4
    %vm500 = vcmask 1043456
    %vm501 = vmand %vm500, %vm112
    %v502 = vld [vmem:[#allocation4] sm:$0xf]
    %v503 = vsel %vm501, %v486, %v502
    %504 = vst [vmem:[#allocation4] sm:$0xf] %v503
    %505 = vst [vmem:[#allocation4 + $0x4] sm:$0xf] %v495
    %v506 = vld [vmem:[#allocation4 + $0x8] sm:$0x1]
    %v507 = vsel %vm471, %v496, %v506
    %508 = vst [vmem:[#allocation4 + $0x8] sm:$0x1] %v507
    %v509 = vpack.c.bf16 %v424, %v424
    %v510 = vpack.c.bf16 %v426, %v426
    %v512 = vshrl.u32 %v509, 16
    %v514 = vrot.slane %v512, 7
    %v515 = vshll.u32 %v509, 16
    %v517 = vor.u32 %v514, %v515
    %v518 = vrot.slane %v514, 4
    %v520 = vshrl.u32 %v510, 16
    %v522 = vrot.slane %v520, 7
    %v523 = vshll.u32 %v510, 16
    %v525 = vor.u32 %v522, %v523
    %v526 = vsel %vm92, %v518, %v525
    %v527 = vrot.slane %v522, 4
    %v531 = vld [vmem:[#allocation3 + $0x8] sm:$0xf]
    %v532 = vsel %vm501, %v517, %v531
    %533 = vst [vmem:[#allocation3 + $0x8] sm:$0xf] %v532
    %534 = vst [vmem:[#allocation3 + $0xc] sm:$0xf] %v526
    %v535 = vld [vmem:[#allocation3 + $0x10] sm:$0x1]
    %v536 = vsel %vm471, %v527, %v535
    %537 = vst [vmem:[#allocation3 + $0x10] sm:$0x1] %v536
    %vm538 = vmand %vm470, %vm112
    %v539 = vld [vmem:[#allocation3 + $0x10] sm:$0x1]
    %v540 = vsel %vm538, 0, %v539
    %541 = vst [vmem:[#allocation3 + $0x10] sm:$0x1] %v540
    %v542 = vld [vmem:[#allocation4 + $0x8] sm:$0x1]
    %v543 = vsel %vm538, 0, %v542
    %544 = vst [vmem:[#allocation4 + $0x8] sm:$0x1] %v543
    %v545 = vpack.c.bf16 %v462, %v462
    %v546 = vpack.c.bf16 %v464, %v464
    %vm549 = vcmask 1044484
    %vm550 = vmor %vm470, %vm549
    %v551 = vrot.slane %v545, 7
    %v552 = vrot.slane %v551, 4
    %v553 = vrot.slane %v546, 7
    %v554 = vsel %vm550, %v552, %v553
    %v555 = vrot.slane %v553, 4
    %559 = vst [vmem:[#allocation4 + $0x8] sm:$0xe] %v551
    %560 = vst [vmem:[#allocation4 + $0xc] sm:$0xf] %v554
    %561 = vst [vmem:[#allocation4 + $0x10] sm:$0x1] %v555
    %v562 = vld [vmem:[%s4] sm:$0x1]
    %v563 = vld [vmem:[#allocation4] sm:$0xf]
    %v564 = vld [vmem:[#allocation4 + $0x4] sm:$0xf]
    %v565 = vld [vmem:[#allocation4 + $0x8] sm:$0xf]
    %v566 = vld [vmem:[#allocation4 + $0xc] sm:$0xf]
    %v567 = vld [vmem:[#allocation4 + $0x10] sm:$0x1]
    %v568 = vld [vmem:[#allocation11] sm:$0xf]
    %v569 = vld [vmem:[#allocation11 + $0x4] sm:$0xf]
    %v570 = vld [vmem:[#allocation11 + $0x8] sm:$0xf]
    %v571 = vld [vmem:[#allocation11 + $0xc] sm:$0xf]
    %v572 = vld [vmem:[#allocation11 + $0x10] sm:$0xf]
    %v573 = vld [vmem:[#allocation11 + $0x14] sm:$0xf]
    %v574 = vld [vmem:[#allocation11 + $0x18] sm:$0xf]
    %v575 = vld [vmem:[#allocation11 + $0x1c] sm:$0xf]
    %v576 = vld [vmem:[#allocation11 + $0x20] sm:$0xf]
    %v577 = vld [vmem:[#allocation11 + $0x24] sm:$0xf]
    %v578 = vld [vmem:[#allocation11 + $0x28] sm:$0xf]
    %v579 = vld [vmem:[#allocation11 + $0x2c] sm:$0xf]
    %v580 = vld [vmem:[#allocation11 + $0x30] sm:$0xf]
    %v581 = vld [vmem:[#allocation11 + $0x34] sm:$0xf]
    %v582 = vld [vmem:[#allocation11 + $0x38] sm:$0xf]
    %v583 = vld [vmem:[#allocation11 + $0x3c] sm:$0xf]
    %v589 = vunpack.c.l.b16 %v563
    %v590 = vunpack.c.l.b16 %v564
    %v591 = vunpack.c.l.b16 %v565
    %v592 = vunpack.c.l.b16 %v566
    %v593 = vunpack.c.l.b16 %v567
    %v594 = vpack.c.b16 %v590, %v589
    %v595 = vpack.c.b16 %v592, %v591
    %v596 = vpack.c.b16 %v593, %v593
    %v616 = vunpack.c.l.b16 %v568
    %v617 = vunpack.c.l.b16 %v569
    %v618 = vunpack.c.l.b16 %v570
    %v619 = vunpack.c.l.b16 %v571
    %v620 = vunpack.c.l.b16 %v572
    %v621 = vunpack.c.l.b16 %v573
    %v622 = vunpack.c.l.b16 %v574
    %v623 = vunpack.c.l.b16 %v575
    %v624 = vunpack.c.l.b16 %v576
    %v625 = vunpack.c.l.b16 %v577
    %v626 = vunpack.c.l.b16 %v578
    %v627 = vunpack.c.l.b16 %v579
    %v628 = vunpack.c.l.b16 %v580
    %v629 = vunpack.c.l.b16 %v581
    %v630 = vunpack.c.l.b16 %v582
    %v631 = vunpack.c.l.b16 %v583
    %v632 = vpack.c.b16 %v617, %v616
    %v633 = vpack.c.b16 %v619, %v618
    %v634 = vpack.c.b16 %v621, %v620
    %v635 = vpack.c.b16 %v623, %v622
    %v636 = vpack.c.b16 %v625, %v624
    %v637 = vpack.c.b16 %v627, %v626
    %v638 = vpack.c.b16 %v629, %v628
    %v639 = vpack.c.b16 %v631, %v630
    %648 = vmatpush.bf16.msra.mxu0 %v639
    %649 = vmatpush.bf16.msra.mxu0 %v638
    %650 = vmatpush.bf16.msra.mxu0 %v637
    %651 = vmatpush.bf16.msra.mxu0 %v636
    %652 = vmatpush.bf16.msra.mxu0 %v635
    %653 = vmatpush.bf16.msra.mxu0 %v634
    %654 = vmatpush.bf16.msra.mxu0 %v633
    %655 = vmatpush.bf16.msra.mxu0 %v632
    %656 = vmatmul.bf16.gmra.mxu0 %v594
    %v657 = vpop.f32.mrf.mxu0
    %v658 = vadd.f32 0.0, %v657
    %v659 = vpop.f32.mrf.mxu0
    %v660 = vadd.f32 0.0, %v659
    %661 = vmatmul.bf16.gmra.mxu0 %v595
    %v662 = vpop.f32.mrf.mxu0
    %v663 = vadd.f32 0.0, %v662
    %v664 = vpop.f32.mrf.mxu0
    %v665 = vadd.f32 0.0, %v664
    %666 = vmatmul.bf16.gmra.mxu0 %v596
    %v667 = vpop.f32.mrf.mxu0
    %v668 = vadd.f32 0.0, %v667
    %v669 = vpop.f32.mrf.mxu0
    %670 = vdwg.mxu0
    %v672 = vperm.slane %v562, 0
    %v674 = vadd.f32 %v672, %v658
    %v675 = vadd.f32 %v672, %v660
    %v676 = vadd.f32 %v672, %v663
    %v677 = vadd.f32 %v672, %v665
    %v678 = vadd.f32 %v672, %v668
    %v679 = vld [vmem:[#allocation3] sm:$0xf]
    %v680 = vld [vmem:[#allocation3 + $0x4] sm:$0xf]
    %v681 = vld [vmem:[#allocation3 + $0x8] sm:$0xf]
    %v682 = vld [vmem:[#allocation3 + $0xc] sm:$0xf]
    %v683 = vld [vmem:[#allocation3 + $0x10] sm:$0x1]
    %s684 = scalar_lea.vmem [#allocation11], 64
    %v685 = vld [vmem:[%s684] sm:$0xf]
    %v686 = vld [vmem:[%s684 + $0x4] sm:$0xf]
    %v687 = vld [vmem:[%s684 + $0x8] sm:$0xf]
    %v688 = vld [vmem:[%s684 + $0xc] sm:$0xf]
    %v689 = vld [vmem:[%s684 + $0x10] sm:$0xf]
    %v690 = vld [vmem:[%s684 + $0x14] sm:$0xf]
    %v691 = vld [vmem:[%s684 + $0x18] sm:$0xf]
    %v692 = vld [vmem:[%s684 + $0x1c] sm:$0xf]
    %v693 = vld [vmem:[%s684 + $0x20] sm:$0xf]
    %v694 = vld [vmem:[%s684 + $0x24] sm:$0xf]
    %v695 = vld [vmem:[%s684 + $0x28] sm:$0xf]
    %v696 = vld [vmem:[%s684 + $0x2c] sm:$0xf]
    %v697 = vld [vmem:[%s684 + $0x30] sm:$0xf]
    %v698 = vld [vmem:[%s684 + $0x34] sm:$0xf]
    %v699 = vld [vmem:[%s684 + $0x38] sm:$0xf]
    %v700 = vld [vmem:[%s684 + $0x3c] sm:$0xf]
    %v706 = vunpack.c.l.b16 %v679
    %v707 = vunpack.c.l.b16 %v680
    %v708 = vunpack.c.l.b16 %v681
    %v709 = vunpack.c.l.b16 %v682
    %v710 = vunpack.c.l.b16 %v683
    %v711 = vpack.c.b16 %v707, %v706
    %v712 = vpack.c.b16 %v709, %v708
    %v713 = vpack.c.b16 %v710, %v710
    %v733 = vunpack.c.l.b16 %v685
    %v734 = vunpack.c.l.b16 %v686
    %v735 = vunpack.c.l.b16 %v687
    %v736 = vunpack.c.l.b16 %v688
    %v737 = vunpack.c.l.b16 %v689
    %v738 = vunpack.c.l.b16 %v690
    %v739 = vunpack.c.l.b16 %v691
    %v740 = vunpack.c.l.b16 %v692
    %v741 = vunpack.c.l.b16 %v693
    %v742 = vunpack.c.l.b16 %v694
    %v743 = vunpack.c.l.b16 %v695
    %v744 = vunpack.c.l.b16 %v696
    %v745 = vunpack.c.l.b16 %v697
    %v746 = vunpack.c.l.b16 %v698
    %v747 = vunpack.c.l.b16 %v699
    %v748 = vunpack.c.l.b16 %v700
    %v749 = vpack.c.b16 %v734, %v733
    %v750 = vpack.c.b16 %v736, %v735
    %v751 = vpack.c.b16 %v738, %v737
    %v752 = vpack.c.b16 %v740, %v739
    %v753 = vpack.c.b16 %v742, %v741
    %v754 = vpack.c.b16 %v744, %v743
    %v755 = vpack.c.b16 %v746, %v745
    %v756 = vpack.c.b16 %v748, %v747
    %765 = vmatpush.bf16.msra.mxu0 %v756
    %766 = vmatpush.bf16.msra.mxu0 %v755
    %767 = vmatpush.bf16.msra.mxu0 %v754
    %768 = vmatpush.bf16.msra.mxu0 %v753
    %769 = vmatpush.bf16.msra.mxu0 %v752
    %770 = vmatpush.bf16.msra.mxu0 %v751
    %771 = vmatpush.bf16.msra.mxu0 %v750
    %772 = vmatpush.bf16.msra.mxu0 %v749
    %773 = vmatmul.bf16.gmra.mxu0 %v711
    %v774 = vpop.f32.mrf.mxu0
    %v775 = vadd.f32 0.0, %v774
    %v776 = vpop.f32.mrf.mxu0
    %v777 = vadd.f32 0.0, %v776
    %778 = vmatmul.bf16.gmra.mxu0 %v712
    %v779 = vpop.f32.mrf.mxu0
    %v780 = vadd.f32 0.0, %v779
    %v781 = vpop.f32.mrf.mxu0
    %v782 = vadd.f32 0.0, %v781
    %783 = vmatmul.bf16.gmra.mxu0 %v713
    %v784 = vpop.f32.mrf.mxu0
    %v785 = vadd.f32 0.0, %v784
    %v786 = vpop.f32.mrf.mxu0
    %787 = vdwg.mxu0
    %v788 = vadd.f32 %v674, %v775
    %v789 = vadd.f32 %v675, %v777
    %v790 = vadd.f32 %v676, %v780
    %v791 = vadd.f32 %v677, %v782
    %v792 = vadd.f32 %v678, %v785
    %s793 = scalar_lea.vmem [#allocation11], 128
    %v794 = vld [vmem:[%s793] sm:$0xf]
    %v795 = vld [vmem:[%s793 + $0x4] sm:$0xf]
    %v796 = vld [vmem:[%s793 + $0x8] sm:$0xf]
    %v797 = vld [vmem:[%s793 + $0xc] sm:$0xf]
    %v798 = vld [vmem:[%s793 + $0x10] sm:$0xf]
    %v799 = vld [vmem:[%s793 + $0x14] sm:$0xf]
    %v800 = vld [vmem:[%s793 + $0x18] sm:$0xf]
    %v801 = vld [vmem:[%s793 + $0x1c] sm:$0xf]
    %v802 = vld [vmem:[%s793 + $0x20] sm:$0xf]
    %v803 = vld [vmem:[%s793 + $0x24] sm:$0xf]
    %v804 = vld [vmem:[%s793 + $0x28] sm:$0xf]
    %v805 = vld [vmem:[%s793 + $0x2c] sm:$0xf]
    %v806 = vld [vmem:[%s793 + $0x30] sm:$0xf]
    %v807 = vld [vmem:[%s793 + $0x34] sm:$0xf]
    %v808 = vld [vmem:[%s793 + $0x38] sm:$0xf]
    %v809 = vld [vmem:[%s793 + $0x3c] sm:$0xf]
    %vm810 = vsmask.f32 7424
    %v812 = vshrl.u32 %v594, 16
    %v814 = vshll.u32 %v594, 16
    %v816 = vrot.slane %v814, 1
    %v817 = vor.u32 %v812, %v816
    %v819 = vshll.u32 %v595, 16
    %v821 = vrot.slane %v819, 1
    %v822 = vsel %vm810, %v817, %v821
    %v823 = vshrl.u32 %v595, 16
    %v825 = vor.u32 %v823, %v821
    %v827 = vshll.u32 %v596, 16
    %v829 = vrot.slane %v827, 1
    %v830 = vsel %vm810, %v825, %v829
    %v831 = vshrl.u32 %v596, 16
    %v852 = vunpack.c.l.b16 %v794
    %v853 = vunpack.c.l.b16 %v795
    %v854 = vunpack.c.l.b16 %v796
    %v855 = vunpack.c.l.b16 %v797
    %v856 = vunpack.c.l.b16 %v798
    %v857 = vunpack.c.l.b16 %v799
    %v858 = vunpack.c.l.b16 %v800
    %v859 = vunpack.c.l.b16 %v801
    %v860 = vunpack.c.l.b16 %v802
    %v861 = vunpack.c.l.b16 %v803
    %v862 = vunpack.c.l.b16 %v804
    %v863 = vunpack.c.l.b16 %v805
    %v864 = vunpack.c.l.b16 %v806
    %v865 = vunpack.c.l.b16 %v807
    %v866 = vunpack.c.l.b16 %v808
    %v867 = vunpack.c.l.b16 %v809
    %v868 = vpack.c.b16 %v853, %v852
    %v869 = vpack.c.b16 %v855, %v854
    %v870 = vpack.c.b16 %v857, %v856
    %v871 = vpack.c.b16 %v859, %v858
    %v872 = vpack.c.b16 %v861, %v860
    %v873 = vpack.c.b16 %v863, %v862
    %v874 = vpack.c.b16 %v865, %v864
    %v875 = vpack.c.b16 %v867, %v866
    %884 = vmatpush.bf16.msra.mxu0 %v875
    %885 = vmatpush.bf16.msra.mxu0 %v874
    %886 = vmatpush.bf16.msra.mxu0 %v873
    %887 = vmatpush.bf16.msra.mxu0 %v872
    %888 = vmatpush.bf16.msra.mxu0 %v871
    %889 = vmatpush.bf16.msra.mxu0 %v870
    %890 = vmatpush.bf16.msra.mxu0 %v869
    %891 = vmatpush.bf16.msra.mxu0 %v868
    %892 = vmatmul.bf16.gmra.mxu0 %v822
    %v893 = vpop.f32.mrf.mxu0
    %v894 = vadd.f32 0.0, %v893
    %v895 = vpop.f32.mrf.mxu0
    %v896 = vadd.f32 0.0, %v895
    %897 = vmatmul.bf16.gmra.mxu0 %v830
    %v898 = vpop.f32.mrf.mxu0
    %v899 = vadd.f32 0.0, %v898
    %v900 = vpop.f32.mrf.mxu0
    %v901 = vadd.f32 0.0, %v900
    %902 = vmatmul.bf16.gmra.mxu0 %v831
    %v903 = vpop.f32.mrf.mxu0
    %v904 = vadd.f32 0.0, %v903
    %v905 = vpop.f32.mrf.mxu0
    %906 = vdwg.mxu0
    %v907 = vadd.f32 %v788, %v894
    %v908 = vadd.f32 %v789, %v896
    %v909 = vadd.f32 %v790, %v899
    %v910 = vadd.f32 %v791, %v901
    %v911 = vadd.f32 %v792, %v904
    %912 = vmatpush.bf16.msra.mxu0 %v639
    %913 = vmatpush.bf16.msra.mxu0 %v638
    %914 = vmatpush.bf16.msra.mxu0 %v637
    %915 = vmatpush.bf16.msra.mxu0 %v636
    %916 = vmatpush.bf16.msra.mxu0 %v635
    %917 = vmatpush.bf16.msra.mxu0 %v634
    %918 = vmatpush.bf16.msra.mxu0 %v633
    %919 = vmatpush.bf16.msra.mxu0 %v632
    %920 = vmatmul.bf16.gmra.mxu0 %v711
    %v921 = vpop.f32.mrf.mxu0
    %v922 = vadd.f32 0.0, %v921
    %v923 = vpop.f32.mrf.mxu0
    %v924 = vadd.f32 0.0, %v923
    %925 = vmatmul.bf16.gmra.mxu0 %v712
    %v926 = vpop.f32.mrf.mxu0
    %v927 = vadd.f32 0.0, %v926
    %v928 = vpop.f32.mrf.mxu0
    %v929 = vadd.f32 0.0, %v928
    %930 = vmatmul.bf16.gmra.mxu0 %v713
    %v931 = vpop.f32.mrf.mxu0
    %v932 = vadd.f32 0.0, %v931
    %v933 = vpop.f32.mrf.mxu0
    %934 = vdwg.mxu0
    %v935 = vadd.f32 %v672, %v922
    %v936 = vadd.f32 %v672, %v924
    %v937 = vadd.f32 %v672, %v927
    %v938 = vadd.f32 %v672, %v929
    %v939 = vadd.f32 %v672, %v932
    %940 = vmatpush.bf16.msra.mxu0 %v756
    %941 = vmatpush.bf16.msra.mxu0 %v755
    %942 = vmatpush.bf16.msra.mxu0 %v754
    %943 = vmatpush.bf16.msra.mxu0 %v753
    %944 = vmatpush.bf16.msra.mxu0 %v752
    %945 = vmatpush.bf16.msra.mxu0 %v751
    %946 = vmatpush.bf16.msra.mxu0 %v750
    %947 = vmatpush.bf16.msra.mxu0 %v749
    %948 = vmatmul.bf16.gmra.mxu0 %v822
    %v949 = vpop.f32.mrf.mxu0
    %v950 = vadd.f32 0.0, %v949
    %v951 = vpop.f32.mrf.mxu0
    %v952 = vadd.f32 0.0, %v951
    %953 = vmatmul.bf16.gmra.mxu0 %v830
    %v954 = vpop.f32.mrf.mxu0
    %v955 = vadd.f32 0.0, %v954
    %v956 = vpop.f32.mrf.mxu0
    %v957 = vadd.f32 0.0, %v956
    %958 = vmatmul.bf16.gmra.mxu0 %v831
    %v959 = vpop.f32.mrf.mxu0
    %v960 = vadd.f32 0.0, %v959
    %v961 = vpop.f32.mrf.mxu0
    %962 = vdwg.mxu0
    %v963 = vadd.f32 %v935, %v950
    %v964 = vadd.f32 %v936, %v952
    %v965 = vadd.f32 %v937, %v955
    %v966 = vadd.f32 %v938, %v957
    %v967 = vadd.f32 %v939, %v960
    %v969 = vshrl.u32 %v711, 16
    %v971 = vshll.u32 %v711, 16
    %v973 = vrot.slane %v971, 1
    %v974 = vor.u32 %v969, %v973
    %v976 = vshll.u32 %v712, 16
    %v978 = vrot.slane %v976, 1
    %v979 = vsel %vm810, %v974, %v978
    %v980 = vshrl.u32 %v712, 16
    %v982 = vor.u32 %v980, %v978
    %v984 = vshll.u32 %v713, 16
    %v986 = vrot.slane %v984, 1
    %v987 = vsel %vm810, %v982, %v986
    %v988 = vshrl.u32 %v713, 16
    %993 = vmatpush.bf16.msra.mxu0 %v875
    %994 = vmatpush.bf16.msra.mxu0 %v874
    %995 = vmatpush.bf16.msra.mxu0 %v873
    %996 = vmatpush.bf16.msra.mxu0 %v872
    %997 = vmatpush.bf16.msra.mxu0 %v871
    %998 = vmatpush.bf16.msra.mxu0 %v870
    %999 = vmatpush.bf16.msra.mxu0 %v869
    %1000 = vmatpush.bf16.msra.mxu0 %v868
    %1001 = vmatmul.bf16.gmra.mxu0 %v979
    %v1002 = vpop.f32.mrf.mxu0
    %v1003 = vadd.f32 0.0, %v1002
    %v1004 = vpop.f32.mrf.mxu0
    %v1005 = vadd.f32 0.0, %v1004
    %1006 = vmatmul.bf16.gmra.mxu0 %v987
    %v1007 = vpop.f32.mrf.mxu0
    %v1008 = vadd.f32 0.0, %v1007
    %v1009 = vpop.f32.mrf.mxu0
    %v1010 = vadd.f32 0.0, %v1009
    %1011 = vmatmul.bf16.gmra.mxu0 %v988
    %v1012 = vpop.f32.mrf.mxu0
    %v1013 = vadd.f32 0.0, %v1012
    %v1014 = vpop.f32.mrf.mxu0
    %1015 = vdwg.mxu0
    %v1016 = vadd.f32 %v963, %v1003
    %v1017 = vadd.f32 %v964, %v1005
    %v1018 = vadd.f32 %v965, %v1008
    %v1019 = vadd.f32 %v966, %v1010
    %v1020 = vadd.f32 %v967, %v1013
    %1021 = vst [vmem:[#allocation13] sm:$0xff] %v907
    %1022 = vst [vmem:[#allocation13 + $0x8] sm:$0xff] %v908
    %s1023 = scalar_lea.vmem [#allocation13], 16
    %1024 = vst [vmem:[%s1023] sm:$0xff] %v1016
    %1025 = vst [vmem:[%s1023 + $0x8] sm:$0xff] %v1017
    %s1026 = scalar_lea.vmem [#allocation13], 32
    %1027 = vst [vmem:[%s1026 - $0x1] sm:$0xfe] %v909
    %1028 = vst [vmem:[%s1026 + $0x7] sm:$0xff] %v910
    %1029 = vst [vmem:[%s1026 + $0xf] sm:$0x1] %v911
    %s1030 = scalar_lea.vmem [#allocation13], 48
    %1031 = vst [vmem:[%s1030 - $0x1] sm:$0xfe] %v1018
    %1032 = vst [vmem:[%s1030 + $0x7] sm:$0xff] %v1019
    %1033 = vst [vmem:[%s1030 + $0xf] sm:$0x1] %v1020
    // Predicated region
    $region38: #{tpu_custom_call.1} parent=1 // pred_check
      _
    $region39: #{tpu_custom_call.1} parent=1 // pred_check_branch
      %1035 = sbr.rel (0) target = $region41
    $region40: #{tpu_custom_call.1} parent=1 // pred_region
      %1037 = vsyncadd [#allocation7], 0
      %s1038 = sshll.u32 [#allocation13], 4
      %s1039 = int_to_ptr.vmem [resolvable:$true] %s1038
      %s1040 = sshll.u32 %s5, 4
      %s1041 = int_to_ptr.hbm [resolvable:$true] %s1040
      %1046 = dma.vmem_to_hbm [thread:$0]  %s1039, 1024, %s1041, [#allocation7], 128, 128, 8
    $region41: #{tpu_custom_call.1} parent=1 // pred_fallthru
      _
    // Predicated region
    $region42: #{tpu_custom_call.1} parent=1 // pred_check
      _
    $region43: #{tpu_custom_call.1} parent=1 // pred_check_branch
      %1048 = sbr.rel (0) target = $region45
    $region44: #{tpu_custom_call.1} parent=1 // pred_region
      %1050 = dma.done [#allocation7], 1024
    $region45: #{tpu_custom_call.1} parent=1 // pred_fallthru
      _
    %1051 = vsyncpa [#allocation6], 1
    %1052 = vsyncpa [#allocation9], 1
    %1053 = vsyncpa [#allocation12], 1
    %1054 = vsyncpa [#allocation7], 1

// kernel: tpu_custom_call.1
$region0: #{tpu_custom_call.1}
  #allocation0 [shape = 'u32[]', space=smem, size = 0x4, offset = 0x4, fixed_abs, tag = 'smem constant byte address 0x4 - core index']
  #allocation1 [shape = 'u32[72,128]{1,0:T(1,128)}', space=vmem, size = 0x9000, scoped, tag = 'internal scratch']
  #allocation2 [shape = 'bf16[32,192]{1,0:T(8,128)(2,1)}', space=vmem, size = 0x4000, scoped, tag = 'scratch operand']
  #allocation3 [shape = 'bf16[34,128]{1,0:T(8,128)(2,1)}', space=vmem, size = 0x2800, scoped, tag = 'scratch operand']
  #allocation4 [shape = 'bf16[34,128]{1,0:T(8,128)(2,1)}', space=vmem, size = 0x2800, scoped, tag = 'scratch operand']
  %s0 = inlined_call_operand.hbm [shape: bf16[2,16,64], index: 0, kind: input, shape index: {}]
  %s1 = inlined_call_operand.hbm [shape: bf16[192,256], index: 1, kind: input, shape index: {}]
  %s2 = inlined_call_operand.hbm [shape: f32[1,256], index: 2, kind: input, shape index: {}]
  %s3 = inlined_call_operand.hbm [shape: bf16[3,128,128], index: 3, kind: input, shape index: {}]
  %s4 = inlined_call_operand.vmem [shape: f32[1,128], index: 4, kind: input, shape index: {}]
  %s5 = inlined_call_operand.hbm [shape: f32[2,2,16,128], index: 5, kind: output, shape index: {}]
  %s6 = sld [smem:[#allocation0]]
  $region46: #{tpu_custom_call.1} parent=0
    _
  %s8 = ssub.s32 1, %s6
  %s9 = scalar_select 0, %s8, %s6
  $region1: #{tpu_custom_call.1} parent=0
    #allocation5 [shape = 'u8[8192]{0}', space=vmem, size = 0x2000, scoped, tag = 'input window, operand 0, single buffered']
    #allocation6 [shape = 's32[1]{0}', space=sflag, size = 0x4, scoped, tag = 'scoped memory for tpu_custom_call.1']
    #allocation7 [shape = 's32[1]{0}', space=sflag, size = 0x4, scoped, tag = 'scoped memory for tpu_custom_call.1']
    #allocation8 [shape = 'u8[98304]{0}', space=vmem, size = 0x18000, scoped, tag = 'input window, operand 1, single buffered']
    #allocation9 [shape = 's32[1]{0}', space=sflag, size = 0x4, scoped, tag = 'scoped memory for tpu_custom_call.1']
    #allocation10 [shape = 'u8[1024]{0}', space=vmem, size = 0x400, scoped, tag = 'input window, operand 2, single buffered']
    #allocation11 [shape = 'u8[98304]{0}', space=vmem, size = 0x18000, scoped, tag = 'input window, operand 3, single buffered']
    #allocation12 [shape = 's32[1]{0}', space=sflag, size = 0x4, scoped, tag = 'scoped memory for tpu_custom_call.1']
    #allocation13 [shape = 'u8[32768]{0}', space=vmem, size = 0x8000, scoped, tag = 'output window, operand 0, single buffered']
    %10 = vsyncpa [#allocation6], 0
    %11 = vsyncpa [#allocation9], 0
    %12 = vsyncpa [#allocation12], 0
    %13 = vsyncpa [#allocation7], 0
    // Predicated region
    $region2: #{tpu_custom_call.1} parent=1 // pred_check
      _
    $region3: #{tpu_custom_call.1} parent=1 // pred_check_branch
      %15 = sbr.rel (0) target = $region5
    $region4: #{tpu_custom_call.1} parent=1 // pred_region
      %17 = vsyncadd [#allocation6], 0
      %s18 = sshll.u32 %s0, 4
      %s19 = int_to_ptr.hbm [resolvable:$true] %s18
      %s20 = sshll.u32 [#allocation5], 4
      %s21 = int_to_ptr.vmem [resolvable:$true] %s20
      %26 = dma.hbm_to_vmem [thread:$0]  %s19, 256, %s21, [#allocation6], 64, 64, 4
    $region5: #{tpu_custom_call.1} parent=1 // pred_fallthru
      _
    // Predicated region
    $region6: #{tpu_custom_call.1} parent=1 // pred_check
      _
    $region7: #{tpu_custom_call.1} parent=1 // pred_check_branch
      %28 = sbr.rel (0) target = $region9
    $region8: #{tpu_custom_call.1} parent=1 // pred_region
      %30 = vsyncadd [#allocation9], 0
      %s31 = sshll.u32 %s1, 4
      %s32 = int_to_ptr.hbm [resolvable:$true] %s31
      %s33 = sshll.u32 [#allocation8], 4
      %s34 = int_to_ptr.vmem [resolvable:$true] %s33
      %39 = dma.hbm_to_vmem [thread:$0]  %s32, 3072, %s34, [#allocation9], 128, 128, 8
    $region9: #{tpu_custom_call.1} parent=1 // pred_fallthru
      _
    // Predicated region
    $region10: #{tpu_custom_call.1} parent=1 // pred_check
      _
    $region11: #{tpu_custom_call.1} parent=1 // pred_check_branch
      %41 = sbr.rel (0) target = $region13
    $region12: #{tpu_custom_call.1} parent=1 // pred_region
      %43 = vsyncadd [#allocation9], 0
      %s45 = sshll.u32 %s2, 4
      %s46 = int_to_ptr.hbm [resolvable:$true] %s45
      %s47 = sshll.u32 [#allocation10], 4
      %s48 = int_to_ptr.vmem [resolvable:$true] %s47
      %50 = dma.hbm_to_vmem [thread:$0]  %s46, 32, %s48, [#allocation9]
    $region13: #{tpu_custom_call.1} parent=1 // pred_fallthru
      _
    // Predicated region
    $region14: #{tpu_custom_call.1} parent=1 // pred_check
      _
    $region15: #{tpu_custom_call.1} parent=1 // pred_check_branch
      %52 = sbr.rel (0) target = $region17
    $region16: #{tpu_custom_call.1} parent=1 // pred_region
      %54 = vsyncadd [#allocation12], 0
      %s55 = sshll.u32 %s3, 4
      %s56 = int_to_ptr.hbm [resolvable:$true] %s55
      %s57 = sshll.u32 [#allocation11], 4
      %s58 = int_to_ptr.vmem [resolvable:$true] %s57
      %63 = dma.hbm_to_vmem [thread:$0]  %s56, 3072, %s58, [#allocation12], 64, 64, 4
    $region17: #{tpu_custom_call.1} parent=1 // pred_fallthru
      _
    // Predicated region
    $region18: #{tpu_custom_call.1} parent=1 // pred_check
      _
    $region19: #{tpu_custom_call.1} parent=1 // pred_check_branch
      %65 = sbr.rel (0) target = $region21
    $region20: #{tpu_custom_call.1} parent=1 // pred_region
      _
    $region21: #{tpu_custom_call.1} parent=1 // pred_fallthru
      _
    // Predicated region
    $region22: #{tpu_custom_call.1} parent=1 // pred_check
      _
    $region23: #{tpu_custom_call.1} parent=1 // pred_check_branch
      %67 = sbr.rel (0) target = $region25
    $region24: #{tpu_custom_call.1} parent=1 // pred_region
      %69 = dma.done [#allocation6], 256
    $region25: #{tpu_custom_call.1} parent=1 // pred_fallthru
      _
    // Predicated region
    $region26: #{tpu_custom_call.1} parent=1 // pred_check
      _
    $region27: #{tpu_custom_call.1} parent=1 // pred_check_branch
      %71 = sbr.rel (0) target = $region29
    $region28: #{tpu_custom_call.1} parent=1 // pred_region
      %73 = dma.done [#allocation9], 3072
    $region29: #{tpu_custom_call.1} parent=1 // pred_fallthru
      _
    // Predicated region
    $region30: #{tpu_custom_call.1} parent=1 // pred_check
      _
    $region31: #{tpu_custom_call.1} parent=1 // pred_check_branch
      %75 = sbr.rel (0) target = $region33
    $region32: #{tpu_custom_call.1} parent=1 // pred_region
      %77 = dma.done [#allocation9], 32
    $region33: #{tpu_custom_call.1} parent=1 // pred_fallthru
      _
    // Predicated region
    $region34: #{tpu_custom_call.1} parent=1 // pred_check
      _
    $region35: #{tpu_custom_call.1} parent=1 // pred_check_branch
      %79 = sbr.rel (0) target = $region37
    $region36: #{tpu_custom_call.1} parent=1 // pred_region
      %81 = dma.done [#allocation12], 3072
    $region37: #{tpu_custom_call.1} parent=1 // pred_fallthru
      _
    %v83 = vld [vmem:[#allocation5] sm:$0xf]
    %v84 = vld [vmem:[#allocation5 + $0x4] sm:$0xf]
    %vm85 = vcmask 516096
    %vm86 = vsmask.f32 256
    %vm87 = vmand %vm85, %vm86
    %v88 = vld [vmem:[#allocation2] sm:$0x1]
    %v89 = vsel %vm87, 0, %v88
    %90 = vst [vmem:[#allocation2] sm:$0x1] %v89
    %vm91 = vsmask.f32 4368
    %vm92 = vmor %vm86, %vm91
    %v94 = vshrl.u32 %v83, 16
    %v96 = vrot.slane %v94, 7
    %v97 = vshll.u32 %v83, 16
    %v99 = vor.u32 %v96, %v97
    %v100 = vrot.slane %v96, 4
    %v102 = vshrl.u32 %v84, 16
    %v104 = vrot.slane %v102, 7
    %v105 = vshll.u32 %v84, 16
    %v107 = vor.u32 %v104, %v105
    %v108 = vsel %vm92, %v100, %v107
    %vm111 = vcmask 519168
    %vm112 = vsmask.f32 7938
    %vm113 = vmand %vm111, %vm112
    %v114 = vld [vmem:[#allocation2] sm:$0xf]
    %v115 = vsel %vm113, %v99, %v114
    %116 = vst [vmem:[#allocation2] sm:$0xf] %v115
    %vm117 = vcmask 519168
    %118 = vst.msk [vmem:[#allocation2 + $0x8] sm:$0xf] %vm117, %v108
    %121 = vrot.lane.b32.xlu0 %v83, 64
    %v122 = vpop.permute.xlu0 %121
    %123 = vrot.lane.b32.xlu0 %v84, 64
    %v124 = vpop.permute.xlu0 %123
    %vm127 = vcmask 1043968
    %128 = vst.msk [vmem:[#allocation2] sm:$0xf] %vm127, %v122
    %129 = vst.msk [vmem:[#allocation2 + $0x8] sm:$0xf] %vm127, %v124
    %vm130 = vsmask.f32 3328
    %vm131 = vsmask.f32 7440
    %vm132 = vmor %vm130, %vm131
    %v133 = vrot.slane %v94, 4
    %v134 = vrot.slane %v97, 5
    %v135 = vor.u32 %v133, %v134
    %v136 = vrot.slane %v135, 4
    %v137 = vrot.slane %v105, 5
    %v138 = vsel %vm132, %v136, %v137
    %v139 = vrot.slane %v102, 4
    %v140 = vor.u32 %v139, %v137
    %v141 = vrot.slane %v140, 4
    %144 = vst.msk [vmem:[#allocation2 + $0x4] sm:$0xf] %vm117, %v138
    %vm145 = vmand %vm111, %vm130
    %v146 = vld [vmem:[#allocation2 + $0xc] sm:$0xf]
    %v147 = vsel %vm145, %v141, %v146
    %148 = vst [vmem:[#allocation2 + $0xc] sm:$0xf] %v147
    %vm149 = vcmask 519171
    %vm150 = vsmask.f32 7950
    %vm151 = vmand %vm149, %vm150
    %v152 = vld [vmem:[#allocation2 + $0xc] sm:$0x8]
    %v153 = vsel %vm151, 0, %v152
    %154 = vst [vmem:[#allocation2 + $0xc] sm:$0x8] %v153
    %s155 = scalar_lea.vmem [#allocation5], 8
    %v156 = vld [vmem:[%s155] sm:$0xf]
    %v157 = vld [vmem:[%s155 + $0x4] sm:$0xf]
    %v158 = vld [vmem:[#allocation2 + $0x10] sm:$0x1]
    %v159 = vsel %vm87, 0, %v158
    %160 = vst [vmem:[#allocation2 + $0x10] sm:$0x1] %v159
    %v162 = vshrl.u32 %v156, 16
    %v164 = vrot.slane %v162, 7
    %v165 = vshll.u32 %v156, 16
    %v167 = vor.u32 %v164, %v165
    %v168 = vrot.slane %v164, 4
    %v170 = vshrl.u32 %v157, 16
    %v172 = vrot.slane %v170, 7
    %v173 = vshll.u32 %v157, 16
    %v175 = vor.u32 %v172, %v173
    %v176 = vsel %vm92, %v168, %v175
    %v179 = vld [vmem:[#allocation2 + $0x10] sm:$0xf]
    %v180 = vsel %vm113, %v167, %v179
    %181 = vst [vmem:[#allocation2 + $0x10] sm:$0xf] %v180
    %182 = vst.msk [vmem:[#allocation2 + $0x18] sm:$0xf] %vm117, %v176
    %185 = vrot.lane.b32.xlu0 %v156, 64
    %v186 = vpop.permute.xlu0 %185
    %187 = vrot.lane.b32.xlu0 %v157, 64
    %v188 = vpop.permute.xlu0 %187
    %191 = vst.msk [vmem:[#allocation2 + $0x10] sm:$0xf] %vm127, %v186
    %192 = vst.msk [vmem:[#allocation2 + $0x18] sm:$0xf] %vm127, %v188
    %v193 = vrot.slane %v162, 4
    %v194 = vrot.slane %v165, 5
    %v195 = vor.u32 %v193, %v194
    %v196 = vrot.slane %v195, 4
    %v197 = vrot.slane %v173, 5
    %v198 = vsel %vm132, %v196, %v197
    %v199 = vrot.slane %v170, 4
    %v200 = vor.u32 %v199, %v197
    %v201 = vrot.slane %v200, 4
    %204 = vst.msk [vmem:[#allocation2 + $0x14] sm:$0xf] %vm117, %v198
    %v205 = vld [vmem:[#allocation2 + $0x1c] sm:$0xf]
    %v206 = vsel %vm145, %v201, %v205
    %207 = vst [vmem:[#allocation2 + $0x1c] sm:$0xf] %v206
    %v208 = vld [vmem:[#allocation2 + $0x1c] sm:$0x8]
    %v209 = vsel %vm151, 0, %v208
    %210 = vst [vmem:[#allocation2 + $0x1c] sm:$0x8] %v209
    %v211 = vld [vmem:[#allocation2] sm:$0xff]
    %v212 = vld [vmem:[#allocation2 + $0x8] sm:$0xff]
    %v213 = vld [vmem:[#allocation2 + $0x10] sm:$0xff]
    %v214 = vld [vmem:[#allocation2 + $0x18] sm:$0xff]
    %v215 = vld [vmem:[#allocation8] sm:$0xff]
    %v216 = vld [vmem:[#allocation8 + $0x8] sm:$0xff]
    %v217 = vld [vmem:[#allocation8 + $0x10] sm:$0xff]
    %v218 = vld [vmem:[#allocation8 + $0x18] sm:$0xff]
    %v219 = vld [vmem:[#allocation8 + $0x20] sm:$0xff]
    %v220 = vld [vmem:[#allocation8 + $0x28] sm:$0xff]
    %v221 = vld [vmem:[#allocation8 + $0x30] sm:$0xff]
    %v222 = vld [vmem:[#allocation8 + $0x38] sm:$0xff]
    %v223 = vld [vmem:[#allocation8 + $0x40] sm:$0xff]
    %v224 = vld [vmem:[#allocation8 + $0x48] sm:$0xff]
    %v225 = vld [vmem:[#allocation8 + $0x50] sm:$0xff]
    %v226 = vld [vmem:[#allocation8 + $0x58] sm:$0xff]
    %v227 = vld [vmem:[#allocation8 + $0x60] sm:$0xff]
    %v228 = vld [vmem:[#allocation8 + $0x68] sm:$0xff]
    %v229 = vld [vmem:[#allocation8 + $0x70] sm:$0xff]
    %v230 = vld [vmem:[#allocation8 + $0x78] sm:$0xff]
    %v231 = vld [vmem:[#allocation8 + $0x80] sm:$0xff]
    %v232 = vld [vmem:[#allocation8 + $0x88] sm:$0xff]
    %v233 = vld [vmem:[#allocation8 + $0x90] sm:$0xff]
    %v234 = vld [vmem:[#allocation8 + $0x98] sm:$0xff]
    %v235 = vld [vmem:[#allocation8 + $0xa0] sm:$0xff]
    %v236 = vld [vmem:[#allocation8 + $0xa8] sm:$0xff]
    %v237 = vld [vmem:[#allocation8 + $0xb0] sm:$0xff]
    %v238 = vld [vmem:[#allocation8 + $0xb8] sm:$0xff]
    %v239 = vld [vmem:[#allocation10] sm:$0x3]
    %v241 = vperm.slane %v239, 0
    %v242 = vperm.slane %v239, 1
    %v249 = vunpack.c.l.b16 %v211
    %v250 = vunpack.c.h.b16 %v211
    %v251 = vunpack.c.l.b16 %v212
    %v252 = vunpack.c.h.b16 %v212
    %v253 = vunpack.c.l.b16 %v213
    %v254 = vunpack.c.h.b16 %v213
    %v255 = vunpack.c.l.b16 %v214
    %v256 = vunpack.c.h.b16 %v214
    %v257 = vpack.c.b16 %v251, %v249
    %v258 = vpack.c.b16 %v252, %v250
    %v259 = vpack.c.b16 %v255, %v253
    %v260 = vpack.c.b16 %v256, %v254
    %v287 = vunpack.c.l.b16 %v215
    %v288 = vunpack.c.h.b16 %v215
    %v289 = vunpack.c.l.b16 %v216
    %v290 = vunpack.c.h.b16 %v216
    %v291 = vunpack.c.l.b16 %v217
    %v292 = vunpack.c.h.b16 %v217
    %v293 = vunpack.c.l.b16 %v218
    %v294 = vunpack.c.h.b16 %v218
    %v295 = vunpack.c.l.b16 %v219
    %v296 = vunpack.c.h.b16 %v219
    %v297 = vunpack.c.l.b16 %v220
    %v298 = vunpack.c.h.b16 %v220
    %v299 = vunpack.c.l.b16 %v221
    %v300 = vunpack.c.h.b16 %v221
    %v301 = vunpack.c.l.b16 %v222
    %v302 = vunpack.c.h.b16 %v222
    %v303 = vunpack.c.l.b16 %v223
    %v304 = vunpack.c.h.b16 %v223
    %v305 = vunpack.c.l.b16 %v224
    %v306 = vunpack.c.h.b16 %v224
    %v307 = vunpack.c.l.b16 %v225
    %v308 = vunpack.c.h.b16 %v225
    %v309 = vunpack.c.l.b16 %v226
    %v310 = vunpack.c.h.b16 %v226
    %v311 = vunpack.c.l.b16 %v227
    %v312 = vunpack.c.h.b16 %v227
    %v313 = vunpack.c.l.b16 %v228
    %v314 = vunpack.c.h.b16 %v228
    %v315 = vunpack.c.l.b16 %v229
    %v316 = vunpack.c.h.b16 %v229
    %v317 = vunpack.c.l.b16 %v230
    %v318 = vunpack.c.h.b16 %v230
    %v319 = vunpack.c.l.b16 %v231
    %v320 = vunpack.c.h.b16 %v231
    %v321 = vunpack.c.l.b16 %v232
    %v322 = vunpack.c.h.b16 %v232
    %v323 = vunpack.c.l.b16 %v233
    %v324 = vunpack.c.h.b16 %v233
    %v325 = vunpack.c.l.b16 %v234
    %v326 = vunpack.c.h.b16 %v234
    %v327 = vunpack.c.l.b16 %v235
    %v328 = vunpack.c.h.b16 %v235
    %v329 = vunpack.c.l.b16 %v236
    %v330 = vunpack.c.h.b16 %v236
    %v331 = vunpack.c.l.b16 %v237
    %v332 = vunpack.c.h.b16 %v237
    %v333 = vunpack.c.l.b16 %v238
    %v334 = vunpack.c.h.b16 %v238
    %v335 = vpack.c.b16 %v289, %v287
    %v336 = vpack.c.b16 %v290, %v288
    %v337 = vpack.c.b16 %v293, %v291
    %v338 = vpack.c.b16 %v294, %v292
    %v339 = vpack.c.b16 %v297, %v295
    %v340 = vpack.c.b16 %v298, %v296
    %v341 = vpack.c.b16 %v301, %v299
    %v342 = vpack.c.b16 %v302, %v300
    %v343 = vpack.c.b16 %v305, %v303
    %v344 = vpack.c.b16 %v306, %v304
    %v345 = vpack.c.b16 %v309, %v307
    %v346 = vpack.c.b16 %v310, %v308
    %v347 = vpack.c.b16 %v313, %v311
    %v348 = vpack.c.b16 %v314, %v312
    %v349 = vpack.c.b16 %v317, %v315
    %v350 = vpack.c.b16 %v318, %v316
    %v351 = vpack.c.b16 %v321, %v319
    %v352 = vpack.c.b16 %v322, %v320
    %v353 = vpack.c.b16 %v325, %v323
    %v354 = vpack.c.b16 %v326, %v324
    %v355 = vpack.c.b16 %v329, %v327
    %v356 = vpack.c.b16 %v330, %v328
    %v357 = vpack.c.b16 %v333, %v331
    %v358 = vpack.c.b16 %v334, %v332
    %vm383 = vcmask 523264
    %v385 = vsel %vm383, %v258, 0
    %v388 = vsel %vm383, %v260, 0
    %390 = vmatpush.bf16.msra.mxu0 %v349
    %391 = vmatpush.bf16.msra.mxu0 %v347
    %392 = vmatpush.bf16.msra.mxu0 %v345
    %393 = vmatpush.bf16.msra.mxu0 %v343
    %394 = vmatpush.bf16.msra.mxu0 %v341
    %395 = vmatpush.bf16.msra.mxu0 %v339
    %396 = vmatpush.bf16.msra.mxu0 %v337
    %397 = vmatpush.bf16.msra.mxu0 %v335
    %398 = vmatmul.bf16.gmra.mxu0 %v257
    %v399 = vpop.f32.mrf.mxu0
    %v400 = vadd.f32 %v241, %v399
    %v401 = vpop.f32.mrf.mxu0
    %v402 = vadd.f32 %v241, %v401
    %403 = vmatmul.bf16.gmra.mxu0 %v259
    %v404 = vpop.f32.mrf.mxu0
    %v405 = vadd.f32 %v241, %v404
    %v406 = vpop.f32.mrf.mxu0
    %v407 = vadd.f32 %v241, %v406
    %408 = vdwg.mxu0
    %409 = vmatpush.bf16.msra.mxu0 0
    %410 = vmatpush.bf16.msra.mxu0 0
    %411 = vmatpush.bf16.msra.mxu0 0
    %412 = vmatpush.bf16.msra.mxu0 0
    %413 = vmatpush.bf16.msra.mxu0 %v357
    %414 = vmatpush.bf16.msra.mxu0 %v355
    %415 = vmatpush.bf16.msra.mxu0 %v353
    %416 = vmatpush.bf16.msra.mxu0 %v351
    %417 = vmatmul.bf16.gmra.mxu0 %v385
    %v418 = vpop.f32.mrf.mxu0
    %v419 = vadd.f32 %v400, %v418
    %v420 = vpop.f32.mrf.mxu0
    %v421 = vadd.f32 %v402, %v420
    %422 = vmatmul.bf16.gmra.mxu0 %v388
    %v423 = vpop.f32.mrf.mxu0
    %v424 = vadd.f32 %v405, %v423
    %v425 = vpop.f32.mrf.mxu0
    %v426 = vadd.f32 %v407, %v425
    %427 = vdwg.mxu0
    %428 = vmatpush.bf16.msra.mxu0 %v350
    %429 = vmatpush.bf16.msra.mxu0 %v348
    %430 = vmatpush.bf16.msra.mxu0 %v346
    %431 = vmatpush.bf16.msra.mxu0 %v344
    %432 = vmatpush.bf16.msra.mxu0 %v342
    %433 = vmatpush.bf16.msra.mxu0 %v340
    %434 = vmatpush.bf16.msra.mxu0 %v338
    %435 = vmatpush.bf16.msra.mxu0 %v336
    %436 = vmatmul.bf16.gmra.mxu0 %v257
    %v437 = vpop.f32.mrf.mxu0
    %v438 = vadd.f32 %v242, %v437
    %v439 = vpop.f32.mrf.mxu0
    %v440 = vadd.f32 %v242, %v439
    %441 = vmatmul.bf16.gmra.mxu0 %v259
    %v442 = vpop.f32.mrf.mxu0
    %v443 = vadd.f32 %v242, %v442
    %v444 = vpop.f32.mrf.mxu0
    %v445 = vadd.f32 %v242, %v444
    %446 = vdwg.mxu0
    %447 = vmatpush.bf16.msra.mxu0 0
    %448 = vmatpush.bf16.msra.mxu0 0
    %449 = vmatpush.bf16.msra.mxu0 0
    %450 = vmatpush.bf16.msra.mxu0 0
    %451 = vmatpush.bf16.msra.mxu0 %v358
    %452 = vmatpush.bf16.msra.mxu0 %v356
    %453 = vmatpush.bf16.msra.mxu0 %v354
    %454 = vmatpush.bf16.msra.mxu0 %v352
    %455 = vmatmul.bf16.gmra.mxu0 %v385
    %v456 = vpop.f32.mrf.mxu0
    %v457 = vadd.f32 %v438, %v456
    %v458 = vpop.f32.mrf.mxu0
    %v459 = vadd.f32 %v440, %v458
    %460 = vmatmul.bf16.gmra.mxu0 %v388
    %v461 = vpop.f32.mrf.mxu0
    %v462 = vadd.f32 %v443, %v461
    %v463 = vpop.f32.mrf.mxu0
    %v464 = vadd.f32 %v445, %v463
    %465 = vdwg.mxu0
    %v466 = vpack.c.bf16 %v419, %v419
    %v467 = vpack.c.bf16 %v421, %v421
    %468 = vst [vmem:[#allocation3] sm:$0xf] %v466
    %469 = vst [vmem:[#allocation3 + $0x4] sm:$0xf] %v467
    %vm470 = vcmask 1040384
    %vm471 = vmand %vm470, %vm86
    %v472 = vld [vmem:[#allocation3 + $0x8] sm:$0x1]
    %v473 = vsel %vm471, 0, %v472
    %474 = vst [vmem:[#allocation3 + $0x8] sm:$0x1] %v473
    %v475 = vld [vmem:[#allocation4] sm:$0x1]
    %v476 = vsel %vm471, 0, %v475
    %477 = vst [vmem:[#allocation4] sm:$0x1] %v476
    %v478 = vpack.c.bf16 %v457, %v457
    %v479 = vpack.c.bf16 %v459, %v459
    %v481 = vshrl.u32 %v478, 16
    %v483 = vrot.slane %v481, 7
    %v484 = vshll.u32 %v478, 16
    %v486 = vor.u32 %v483, %v484
    %v487 = vrot.slane %v483, 4
    %v489 = vshrl.u32 %v479, 16
    %v491 = vrot.slane %v489, 7
    %v492 = vshll.u32 %v479, 16
    %v494 = vor.u32 %v491, %v492
    %v495 = vsel %vm92, %v487, %v494
    %v496 = vrot.slane %v491, 4
    %vm500 = vcmask 1043456
    %vm501 = vmand %vm500, %vm112
    %v502 = vld [vmem:[#allocation4] sm:$0xf]
    %v503 = vsel %vm501, %v486, %v502
    %504 = vst [vmem:[#allocation4] sm:$0xf] %v503
    %505 = vst [vmem:[#allocation4 + $0x4] sm:$0xf] %v495
    %v506 = vld [vmem:[#allocation4 + $0x8] sm:$0x1]
    %v507 = vsel %vm471, %v496, %v506
    %508 = vst [vmem:[#allocation4 + $0x8] sm:$0x1] %v507
    %v509 = vpack.c.bf16 %v424, %v424
    %v510 = vpack.c.bf16 %v426, %v426
    %v512 = vshrl.u32 %v509, 16
    %v514 = vrot.slane %v512, 7
    %v515 = vshll.u32 %v509, 16
    %v517 = vor.u32 %v514, %v515
    %v518 = vrot.slane %v514, 4
    %v520 = vshrl.u32 %v510, 16
    %v522 = vrot.slane %v520, 7
    %v523 = vshll.u32 %v510, 16
    %v525 = vor.u32 %v522, %v523
    %v526 = vsel %vm92, %v518, %v525
    %v527 = vrot.slane %v522, 4
    %v531 = vld [vmem:[#allocation3 + $0x8] sm:$0xf]
    %v532 = vsel %vm501, %v517, %v531
    %533 = vst [vmem:[#allocation3 + $0x8] sm:$0xf] %v532
    %534 = vst [vmem:[#allocation3 + $0xc] sm:$0xf] %v526
    %v535 = vld [vmem:[#allocation3 + $0x10] sm:$0x1]
    %v536 = vsel %vm471, %v527, %v535
    %537 = vst [vmem:[#allocation3 + $0x10] sm:$0x1] %v536
    %vm538 = vmand %vm470, %vm112
    %v539 = vld [vmem:[#allocation3 + $0x10] sm:$0x1]
    %v540 = vsel %vm538, 0, %v539
    %541 = vst [vmem:[#allocation3 + $0x10] sm:$0x1] %v540
    %v542 = vld [vmem:[#allocation4 + $0x8] sm:$0x1]
    %v543 = vsel %vm538, 0, %v542
    %544 = vst [vmem:[#allocation4 + $0x8] sm:$0x1] %v543
    %v545 = vpack.c.bf16 %v462, %v462
    %v546 = vpack.c.bf16 %v464, %v464
    %vm549 = vcmask 1044484
    %vm550 = vmor %vm470, %vm549
    %v551 = vrot.slane %v545, 7
    %v552 = vrot.slane %v551, 4
    %v553 = vrot.slane %v546, 7
    %v554 = vsel %vm550, %v552, %v553
    %v555 = vrot.slane %v553, 4
    %559 = vst [vmem:[#allocation4 + $0x8] sm:$0xe] %v551
    %560 = vst [vmem:[#allocation4 + $0xc] sm:$0xf] %v554
    %561 = vst [vmem:[#allocation4 + $0x10] sm:$0x1] %v555
    %v562 = vld [vmem:[%s4] sm:$0x1]
    %v563 = vld [vmem:[#allocation4] sm:$0xf]
    %v564 = vld [vmem:[#allocation4 + $0x4] sm:$0xf]
    %v565 = vld [vmem:[#allocation4 + $0x8] sm:$0xf]
    %v566 = vld [vmem:[#allocation4 + $0xc] sm:$0xf]
    %v567 = vld [vmem:[#allocation4 + $0x10] sm:$0x1]
    %v568 = vld [vmem:[#allocation11] sm:$0xf]
    %v569 = vld [vmem:[#allocation11 + $0x4] sm:$0xf]
    %v570 = vld [vmem:[#allocation11 + $0x8] sm:$0xf]
    %v571 = vld [vmem:[#allocation11 + $0xc] sm:$0xf]
    %v572 = vld [vmem:[#allocation11 + $0x10] sm:$0xf]
    %v573 = vld [vmem:[#allocation11 + $0x14] sm:$0xf]
    %v574 = vld [vmem:[#allocation11 + $0x18] sm:$0xf]
    %v575 = vld [vmem:[#allocation11 + $0x1c] sm:$0xf]
    %v576 = vld [vmem:[#allocation11 + $0x20] sm:$0xf]
    %v577 = vld [vmem:[#allocation11 + $0x24] sm:$0xf]
    %v578 = vld [vmem:[#allocation11 + $0x28] sm:$0xf]
    %v579 = vld [vmem:[#allocation11 + $0x2c] sm:$0xf]
    %v580 = vld [vmem:[#allocation11 + $0x30] sm:$0xf]
    %v581 = vld [vmem:[#allocation11 + $0x34] sm:$0xf]
    %v582 = vld [vmem:[#allocation11 + $0x38] sm:$0xf]
    %v583 = vld [vmem:[#allocation11 + $0x3c] sm:$0xf]
    %v589 = vunpack.c.l.b16 %v563
    %v590 = vunpack.c.l.b16 %v564
    %v591 = vunpack.c.l.b16 %v565
    %v592 = vunpack.c.l.b16 %v566
    %v593 = vunpack.c.l.b16 %v567
    %v594 = vpack.c.b16 %v590, %v589
    %v595 = vpack.c.b16 %v592, %v591
    %v596 = vpack.c.b16 %v593, %v593
    %v616 = vunpack.c.l.b16 %v568
    %v617 = vunpack.c.l.b16 %v569
    %v618 = vunpack.c.l.b16 %v570
    %v619 = vunpack.c.l.b16 %v571
    %v620 = vunpack.c.l.b16 %v572
    %v621 = vunpack.c.l.b16 %v573
    %v622 = vunpack.c.l.b16 %v574
    %v623 = vunpack.c.l.b16 %v575
    %v624 = vunpack.c.l.b16 %v576
    %v625 = vunpack.c.l.b16 %v577
    %v626 = vunpack.c.l.b16 %v578
    %v627 = vunpack.c.l.b16 %v579
    %v628 = vunpack.c.l.b16 %v580
    %v629 = vunpack.c.l.b16 %v581
    %v630 = vunpack.c.l.b16 %v582
    %v631 = vunpack.c.l.b16 %v583
    %v632 = vpack.c.b16 %v617, %v616
    %v633 = vpack.c.b16 %v619, %v618
    %v634 = vpack.c.b16 %v621, %v620
    %v635 = vpack.c.b16 %v623, %v622
    %v636 = vpack.c.b16 %v625, %v624
    %v637 = vpack.c.b16 %v627, %v626
    %v638 = vpack.c.b16 %v629, %v628
    %v639 = vpack.c.b16 %v631, %v630
    %648 = vmatpush.bf16.msra.mxu0 %v639
    %649 = vmatpush.bf16.msra.mxu0 %v638
    %650 = vmatpush.bf16.msra.mxu0 %v637
    %651 = vmatpush.bf16.msra.mxu0 %v636
    %652 = vmatpush.bf16.msra.mxu0 %v635
    %653 = vmatpush.bf16.msra.mxu0 %v634
    %654 = vmatpush.bf16.msra.mxu0 %v633
    %655 = vmatpush.bf16.msra.mxu0 %v632
    %656 = vmatmul.bf16.gmra.mxu0 %v594
    %v657 = vpop.f32.mrf.mxu0
    %v658 = vadd.f32 0.0, %v657
    %v659 = vpop.f32.mrf.mxu0
    %v660 = vadd.f32 0.0, %v659
    %661 = vmatmul.bf16.gmra.mxu0 %v595
    %v662 = vpop.f32.mrf.mxu0
    %v663 = vadd.f32 0.0, %v662
    %v664 = vpop.f32.mrf.mxu0
    %v665 = vadd.f32 0.0, %v664
    %666 = vmatmul.bf16.gmra.mxu0 %v596
    %v667 = vpop.f32.mrf.mxu0
    %v668 = vadd.f32 0.0, %v667
    %v669 = vpop.f32.mrf.mxu0
    %670 = vdwg.mxu0
    %v672 = vperm.slane %v562, 0
    %v674 = vadd.f32 %v672, %v658
    %v675 = vadd.f32 %v672, %v660
    %v676 = vadd.f32 %v672, %v663
    %v677 = vadd.f32 %v672, %v665
    %v678 = vadd.f32 %v672, %v668
    %v679 = vld [vmem:[#allocation3] sm:$0xf]
    %v680 = vld [vmem:[#allocation3 + $0x4] sm:$0xf]
    %v681 = vld [vmem:[#allocation3 + $0x8] sm:$0xf]
    %v682 = vld [vmem:[#allocation3 + $0xc] sm:$0xf]
    %v683 = vld [vmem:[#allocation3 + $0x10] sm:$0x1]
    %s684 = scalar_lea.vmem [#allocation11], 64
    %v685 = vld [vmem:[%s684] sm:$0xf]
    %v686 = vld [vmem:[%s684 + $0x4] sm:$0xf]
    %v687 = vld [vmem:[%s684 + $0x8] sm:$0xf]
    %v688 = vld [vmem:[%s684 + $0xc] sm:$0xf]
    %v689 = vld [vmem:[%s684 + $0x10] sm:$0xf]
    %v690 = vld [vmem:[%s684 + $0x14] sm:$0xf]
    %v691 = vld [vmem:[%s684 + $0x18] sm:$0xf]
    %v692 = vld [vmem:[%s684 + $0x1c] sm:$0xf]
    %v693 = vld [vmem:[%s684 + $0x20] sm:$0xf]
    %v694 = vld [vmem:[%s684 + $0x24] sm:$0xf]
    %v695 = vld [vmem:[%s684 + $0x28] sm:$0xf]
    %v696 = vld [vmem:[%s684 + $0x2c] sm:$0xf]
    %v697 = vld [vmem:[%s684 + $0x30] sm:$0xf]
    %v698 = vld [vmem:[%s684 + $0x34] sm:$0xf]
    %v699 = vld [vmem:[%s684 + $0x38] sm:$0xf]
    %v700 = vld [vmem:[%s684 + $0x3c] sm:$0xf]
    %v706 = vunpack.c.l.b16 %v679
    %v707 = vunpack.c.l.b16 %v680
    %v708 = vunpack.c.l.b16 %v681
    %v709 = vunpack.c.l.b16 %v682
    %v710 = vunpack.c.l.b16 %v683
    %v711 = vpack.c.b16 %v707, %v706
    %v712 = vpack.c.b16 %v709, %v708
    %v713 = vpack.c.b16 %v710, %v710
    %v733 = vunpack.c.l.b16 %v685
    %v734 = vunpack.c.l.b16 %v686
    %v735 = vunpack.c.l.b16 %v687
    %v736 = vunpack.c.l.b16 %v688
    %v737 = vunpack.c.l.b16 %v689
    %v738 = vunpack.c.l.b16 %v690
    %v739 = vunpack.c.l.b16 %v691
    %v740 = vunpack.c.l.b16 %v692
    %v741 = vunpack.c.l.b16 %v693
    %v742 = vunpack.c.l.b16 %v694
    %v743 = vunpack.c.l.b16 %v695
    %v744 = vunpack.c.l.b16 %v696
    %v745 = vunpack.c.l.b16 %v697
    %v746 = vunpack.c.l.b16 %v698
    %v747 = vunpack.c.l.b16 %v699
    %v748 = vunpack.c.l.b16 %v700
    %v749 = vpack.c.b16 %v734, %v733
    %v750 = vpack.c.b16 %v736, %v735
    %v751 = vpack.c.b16 %v738, %v737
    %v752 = vpack.c.b16 %v740, %v739
    %v753 = vpack.c.b16 %v742, %v741
    %v754 = vpack.c.b16 %v744, %v743
    %v755 = vpack.c.b16 %v746, %v745
    %v756 = vpack.c.b16 %v748, %v747
    %765 = vmatpush.bf16.msra.mxu0 %v756
    %766 = vmatpush.bf16.msra.mxu0 %v755
    %767 = vmatpush.bf16.msra.mxu0 %v754
    %768 = vmatpush.bf16.msra.mxu0 %v753
    %769 = vmatpush.bf16.msra.mxu0 %v752
    %770 = vmatpush.bf16.msra.mxu0 %v751
    %771 = vmatpush.bf16.msra.mxu0 %v750
    %772 = vmatpush.bf16.msra.mxu0 %v749
    %773 = vmatmul.bf16.gmra.mxu0 %v711
    %v774 = vpop.f32.mrf.mxu0
    %v775 = vadd.f32 0.0, %v774
    %v776 = vpop.f32.mrf.mxu0
    %v777 = vadd.f32 0.0, %v776
    %778 = vmatmul.bf16.gmra.mxu0 %v712
    %v779 = vpop.f32.mrf.mxu0
    %v780 = vadd.f32 0.0, %v779
    %v781 = vpop.f32.mrf.mxu0
    %v782 = vadd.f32 0.0, %v781
    %783 = vmatmul.bf16.gmra.mxu0 %v713
    %v784 = vpop.f32.mrf.mxu0
    %v785 = vadd.f32 0.0, %v784
    %v786 = vpop.f32.mrf.mxu0
    %787 = vdwg.mxu0
    %v788 = vadd.f32 %v674, %v775
    %v789 = vadd.f32 %v675, %v777
    %v790 = vadd.f32 %v676, %v780
    %v791 = vadd.f32 %v677, %v782
    %v792 = vadd.f32 %v678, %v785
    %s793 = scalar_lea.vmem [#allocation11], 128
    %v794 = vld [vmem:[%s793] sm:$0xf]
    %v795 = vld [vmem:[%s793 + $0x4] sm:$0xf]
    %v796 = vld [vmem:[%s793 + $0x8] sm:$0xf]
    %v797 = vld [vmem:[%s793 + $0xc] sm:$0xf]
    %v798 = vld [vmem:[%s793 + $0x10] sm:$0xf]
    %v799 = vld [vmem:[%s793 + $0x14] sm:$0xf]
    %v800 = vld [vmem:[%s793 + $0x18] sm:$0xf]
    %v801 = vld [vmem:[%s793 + $0x1c] sm:$0xf]
    %v802 = vld [vmem:[%s793 + $0x20] sm:$0xf]
    %v803 = vld [vmem:[%s793 + $0x24] sm:$0xf]
    %v804 = vld [vmem:[%s793 + $0x28] sm:$0xf]
    %v805 = vld [vmem:[%s793 + $0x2c] sm:$0xf]
    %v806 = vld [vmem:[%s793 + $0x30] sm:$0xf]
    %v807 = vld [vmem:[%s793 + $0x34] sm:$0xf]
    %v808 = vld [vmem:[%s793 + $0x38] sm:$0xf]
    %v809 = vld [vmem:[%s793 + $0x3c] sm:$0xf]
    %vm810 = vsmask.f32 7424
    %v812 = vshrl.u32 %v594, 16
    %v814 = vshll.u32 %v594, 16
    %v816 = vrot.slane %v814, 1
    %v817 = vor.u32 %v812, %v816
    %v819 = vshll.u32 %v595, 16
    %v821 = vrot.slane %v819, 1
    %v822 = vsel %vm810, %v817, %v821
    %v823 = vshrl.u32 %v595, 16
    %v825 = vor.u32 %v823, %v821
    %v827 = vshll.u32 %v596, 16
    %v829 = vrot.slane %v827, 1
    %v830 = vsel %vm810, %v825, %v829
    %v831 = vshrl.u32 %v596, 16
    %v852 = vunpack.c.l.b16 %v794
    %v853 = vunpack.c.l.b16 %v795
    %v854 = vunpack.c.l.b16 %v796
    %v855 = vunpack.c.l.b16 %v797
    %v856 = vunpack.c.l.b16 %v798
    %v857 = vunpack.c.l.b16 %v799
    %v858 = vunpack.c.l.b16 %v800
    %v859 = vunpack.c.l.b16 %v801
    %v860 = vunpack.c.l.b16 %v802
    %v861 = vunpack.c.l.b16 %v803
    %v862 = vunpack.c.l.b16 %v804
    %v863 = vunpack.c.l.b16 %v805
    %v864 = vunpack.c.l.b16 %v806
    %v865 = vunpack.c.l.b16 %v807
    %v866 = vunpack.c.l.b16 %v808
    %v867 = vunpack.c.l.b16 %v809
    %v868 = vpack.c.b16 %v853, %v852
    %v869 = vpack.c.b16 %v855, %v854
    %v870 = vpack.c.b16 %v857, %v856
    %v871 = vpack.c.b16 %v859, %v858
    %v872 = vpack.c.b16 %v861, %v860
    %v873 = vpack.c.b16 %v863, %v862
    %v874 = vpack.c.b16 %v865, %v864
    %v875 = vpack.c.b16 %v867, %v866
    %884 = vmatpush.bf16.msra.mxu0 %v875
    %885 = vmatpush.bf16.msra.mxu0 %v874
    %886 = vmatpush.bf16.msra.mxu0 %v873
    %887 = vmatpush.bf16.msra.mxu0 %v872
    %888 = vmatpush.bf16.msra.mxu0 %v871
    %889 = vmatpush.bf16.msra.mxu0 %v870
    %890 = vmatpush.bf16.msra.mxu0 %v869
    %891 = vmatpush.bf16.msra.mxu0 %v868
    %892 = vmatmul.bf16.gmra.mxu0 %v822
    %v893 = vpop.f32.mrf.mxu0
    %v894 = vadd.f32 0.0, %v893
    %v895 = vpop.f32.mrf.mxu0
    %v896 = vadd.f32 0.0, %v895
    %897 = vmatmul.bf16.gmra.mxu0 %v830
    %v898 = vpop.f32.mrf.mxu0
    %v899 = vadd.f32 0.0, %v898
    %v900 = vpop.f32.mrf.mxu0
    %v901 = vadd.f32 0.0, %v900
    %902 = vmatmul.bf16.gmra.mxu0 %v831
    %v903 = vpop.f32.mrf.mxu0
    %v904 = vadd.f32 0.0, %v903
    %v905 = vpop.f32.mrf.mxu0
    %906 = vdwg.mxu0
    %v907 = vadd.f32 %v788, %v894
    %v908 = vadd.f32 %v789, %v896
    %v909 = vadd.f32 %v790, %v899
    %v910 = vadd.f32 %v791, %v901
    %v911 = vadd.f32 %v792, %v904
    %912 = vmatpush.bf16.msra.mxu0 %v639
    %913 = vmatpush.bf16.msra.mxu0 %v638
    %914 = vmatpush.bf16.msra.mxu0 %v637
    %915 = vmatpush.bf16.msra.mxu0 %v636
    %916 = vmatpush.bf16.msra.mxu0 %v635
    %917 = vmatpush.bf16.msra.mxu0 %v634
    %918 = vmatpush.bf16.msra.mxu0 %v633
    %919 = vmatpush.bf16.msra.mxu0 %v632
    %920 = vmatmul.bf16.gmra.mxu0 %v711
    %v921 = vpop.f32.mrf.mxu0
    %v922 = vadd.f32 0.0, %v921
    %v923 = vpop.f32.mrf.mxu0
    %v924 = vadd.f32 0.0, %v923
    %925 = vmatmul.bf16.gmra.mxu0 %v712
    %v926 = vpop.f32.mrf.mxu0
    %v927 = vadd.f32 0.0, %v926
    %v928 = vpop.f32.mrf.mxu0
    %v929 = vadd.f32 0.0, %v928
    %930 = vmatmul.bf16.gmra.mxu0 %v713
    %v931 = vpop.f32.mrf.mxu0
    %v932 = vadd.f32 0.0, %v931
    %v933 = vpop.f32.mrf.mxu0
    %934 = vdwg.mxu0
    %v935 = vadd.f32 %v672, %v922
    %v936 = vadd.f32 %v672, %v924
    %v937 = vadd.f32 %v672, %v927
    %v938 = vadd.f32 %v672, %v929
    %v939 = vadd.f32 %v672, %v932
    %940 = vmatpush.bf16.msra.mxu0 %v756
    %941 = vmatpush.bf16.msra.mxu0 %v755
    %942 = vmatpush.bf16.msra.mxu0 %v754
    %943 = vmatpush.bf16.msra.mxu0 %v753
    %944 = vmatpush.bf16.msra.mxu0 %v752
    %945 = vmatpush.bf16.msra.mxu0 %v751
    %946 = vmatpush.bf16.msra.mxu0 %v750
    %947 = vmatpush.bf16.msra.mxu0 %v749
    %948 = vmatmul.bf16.gmra.mxu0 %v822
    %v949 = vpop.f32.mrf.mxu0
    %v950 = vadd.f32 0.0, %v949
    %v951 = vpop.f32.mrf.mxu0
    %v952 = vadd.f32 0.0, %v951
    %953 = vmatmul.bf16.gmra.mxu0 %v830
    %v954 = vpop.f32.mrf.mxu0
    %v955 = vadd.f32 0.0, %v954
    %v956 = vpop.f32.mrf.mxu0
    %v957 = vadd.f32 0.0, %v956
    %958 = vmatmul.bf16.gmra.mxu0 %v831
    %v959 = vpop.f32.mrf.mxu0
    %v960 = vadd.f32 0.0, %v959
    %v961 = vpop.f32.mrf.mxu0
    %962 = vdwg.mxu0
    %v963 = vadd.f32 %v935, %v950
    %v964 = vadd.f32 %v936, %v952
    %v965 = vadd.f32 %v937, %v955
    %v966 = vadd.f32 %v938, %v957
    %v967 = vadd.f32 %v939, %v960
    %v969 = vshrl.u32 %v711, 16
    %v971 = vshll.u32 %v711, 16
    %v973 = vrot.slane %v971, 1
    %v974 = vor.u32 %v969, %v973
    %v976 = vshll.u32 %v712, 16
    %v978 = vrot.slane %v976, 1
    %v979 = vsel %vm810, %v974, %v978
    %v980 = vshrl.u32 %v712, 16
    %v982 = vor.u32 %v980, %v978
    %v984 = vshll.u32 %v713, 16
    %v986 = vrot.slane %v984, 1
    %v987 = vsel %vm810, %v982, %v986
    %v988 = vshrl.u32 %v713, 16
    %993 = vmatpush.bf16.msra.mxu0 %v875
    %994 = vmatpush.bf16.msra.mxu0 %v874
    %995 = vmatpush.bf16.msra.mxu0 %v873
    %996 = vmatpush.bf16.msra.mxu0 %v872
    %997 = vmatpush.bf16.msra.mxu0 %v871
    %998 = vmatpush.bf16.msra.mxu0 %v870
    %999 = vmatpush.bf16.msra.mxu0 %v869
    %1000 = vmatpush.bf16.msra.mxu0 %v868
    %1001 = vmatmul.bf16.gmra.mxu0 %v979
    %v1002 = vpop.f32.mrf.mxu0
    %v1003 = vadd.f32 0.0, %v1002
    %v1004 = vpop.f32.mrf.mxu0
    %v1005 = vadd.f32 0.0, %v1004
    %1006 = vmatmul.bf16.gmra.mxu0 %v987
    %v1007 = vpop.f32.mrf.mxu0
    %v1008 = vadd.f32 0.0, %v1007
    %v1009 = vpop.f32.mrf.mxu0
    %v1010 = vadd.f32 0.0, %v1009
    %1011 = vmatmul.bf16.gmra.mxu0 %v988
    %v1012 = vpop.f32.mrf.mxu0
    %v1013 = vadd.f32 0.0, %v1012
    %v1014 = vpop.f32.mrf.mxu0
    %1015 = vdwg.mxu0
    %v1016 = vadd.f32 %v963, %v1003
    %v1017 = vadd.f32 %v964, %v1005
    %v1018 = vadd.f32 %v965, %v1008
    %v1019 = vadd.f32 %v966, %v1010
    %v1020 = vadd.f32 %v967, %v1013
    %1021 = vst [vmem:[#allocation13] sm:$0xff] %v907
    %1022 = vst [vmem:[#allocation13 + $0x8] sm:$0xff] %v908
    %s1023 = scalar_lea.vmem [#allocation13], 16
    %1024 = vst [vmem:[%s1023] sm:$0xff] %v1016
    %1025 = vst [vmem:[%s1023 + $0x8] sm:$0xff] %v1017
    %s1026 = scalar_lea.vmem [#allocation13], 32
    %1027 = vst [vmem:[%s1026 - $0x1] sm:$0xfe] %v909
    %1028 = vst [vmem:[%s1026 + $0x7] sm:$0xff] %v910
    %1029 = vst [vmem:[%s1026 + $0xf] sm:$0x1] %v911
    %s1030 = scalar_lea.vmem [#allocation13], 48
    %1031 = vst [vmem:[%s1030 - $0x1] sm:$0xfe] %v1018
    %1032 = vst [vmem:[%s1030 + $0x7] sm:$0xff] %v1019
    %1033 = vst [vmem:[%s1030 + $0xf] sm:$0x1] %v1020
    // Predicated region
    $region38: #{tpu_custom_call.1} parent=1 // pred_check
      _
    $region39: #{tpu_custom_call.1} parent=1 // pred_check_branch
      %1035 = sbr.rel (0) target = $region41
    $region40: #{tpu_custom_call.1} parent=1 // pred_region
      %1037 = vsyncadd [#allocation7], 0
      %s1038 = sshll.u32 [#allocation13], 4
      %s1039 = int_to_ptr.vmem [resolvable:$true] %s1038
      %s1040 = sshll.u32 %s5, 4
      %s1041 = int_to_ptr.hbm [resolvable:$true] %s1040
      %1046 = dma.vmem_to_hbm [thread:$0]  %s1039, 1024, %s1041, [#allocation7], 128, 128, 8
    $region41: #{tpu_custom_call.1} parent=1 // pred_fallthru
      _
    // Predicated region
    $region42: #{tpu_custom_call.1} parent=1 // pred_check
      _
    $region43: #{tpu_custom_call.1} parent=1 // pred_check_branch
      %1048 = sbr.rel (0) target = $region45
    $region44: #{tpu_custom_call.1} parent=1 // pred_region
      %1050 = dma.done [#allocation7], 1024
    $region45: #{tpu_custom_call.1} parent=1 // pred_fallthru
      _
    %1051 = vsyncpa [#allocation6], 1
    %1052 = vsyncpa [#allocation9], 1
    %1053 = vsyncpa [#allocation12], 1
    %1054 = vsyncpa [#allocation7], 1

</llo_original>
